<compile_context>
chip_gen: v7x
topology: tpu7x:2x2x1
jax: 0.10.0
libtpu: 0.0.40
codegen_flags: <defaults>
</compile_context>

<pallas_src>
import functools

import jax
import jax.numpy as jnp
from jax import lax
from jax.experimental import pallas as pl
from jax.experimental.pallas import tpu as pltpu


def _semidual_kernel(x_ref, yst_ref, bias_ref, x2_ref, out_ref, acc_ref):
    # x_ref    : (tm, D)   tile of inputx (operand dtype), resident across j
    # yst_ref  : (D, tn)   tile of (-2 * inputy).T (operand dtype), pipelined over j
    # bias_ref : (1, tn)   ||y||^2 - psi (f32, +inf on padded columns)
    # x2_ref   : (1, tm)   per-row ||x||^2 (f32, precomputed in the wrapper)
    # out_ref  : (1, tm)   per-row minima + ||x||^2, written once at the last j step
    # acc_ref  : (tm, 128) running lane-dense min accumulator (f32 VMEM scratch)
    j = pl.program_id(1)

    @pl.when(j == 0)
    def _init():
        acc_ref[...] = jnp.full(acc_ref.shape, jnp.inf, dtype=acc_ref.dtype)

    x = x_ref[...]                                           # (tm, D)
    tn = yst_ref.shape[1]
    chunk = 256 if tn % 256 == 0 else 128                    # 128-lane native on v5e

    acc = acc_ref[...]
    for k in range(tn // chunk):
        ys_c = yst_ref[:, k * chunk:(k + 1) * chunk]         # (D, chunk)
        # c_ic = -2 <x_i, y_c> (MXU, f32 accumulate) + (||y_c||^2 - psi_c)
        c = lax.dot_general(
            x, ys_c,
            dimension_numbers=(((1,), (0,)), ((), ())),      # (tm, D) @ (D, chunk)
            preferred_element_type=jnp.float32,
        ) + bias_ref[:, k * chunk:(k + 1) * chunk]           # (tm, chunk) f32
        # Fold the chunk down to 128 lanes with elementwise minima (VPU only).
        folded = c[:, 0:128]
        for m in range(1, chunk // 128):
            folded = jnp.minimum(folded, c[:, m * 128:(m + 1) * 128])
        acc = jnp.minimum(acc, folded)
    acc_ref[...] = acc

    @pl.when(j == pl.num_programs(1) - 1)
    def _finalize():
        row_min = jnp.min(acc_ref[...], axis=1)              # (tm,) single XLU reduce
        out_ref[...] = x2_ref[...] + row_min[None, :]        # lane-dense (1, tm) store


def _round_up(n, m):
    return (n + m - 1) // m * m


@functools.partial(jax.jit, static_argnames=("tm", "tn", "operand_dtype"))
def semidual_row_mins(inputx, inputy, psi, *, tm=512, tn=1024,
                      operand_dtype=jnp.bfloat16):
    """Returns min_j (||x_i||^2 + ||y_j||^2 - 2<x_i,y_j> - psi_j) for every row i."""
    Nx, D = inputx.shape
    Ny, Dy = inputy.shape
    assert D == Dy, "feature dims must match"

    # Effective tile sizes (multiples of 128; shrink for small problems).
    tm = min(tm, _round_up(Nx, 128))
    # Keep >= 2 row tiles whenever Nx allows so the "parallel" axis feeds both
    # TensorCores on v7x (no effect on v5e/v6e).
    if _round_up(Nx, 128) >= 2 * 128:
        while tm > 128 and _round_up(Nx, tm) // tm < 2:
            tm = max(128, _round_up(tm // 2, 128))
    tn = min(tn, _round_up(Ny, 128))
    assert tm % 128 == 0 and tn % 128 == 0, "tm/tn must be multiples of 128"
    nx_pad = _round_up(Nx, tm)
    ny_pad = _round_up(Ny, tn)

    # Precompute / pad operands (hoisted out of the kernel inner loop):
    #   x_op = x                 (padded rows -> 0, dropped after the kernel)
    #   ys_t = (-2 * y).T        (D, ny_pad); padded columns are 0 -> dot = 0
    #   bias = ||y||^2 - psi     (f32; padded columns are +inf -> never win the min)
    #   x2   = ||x||^2           (f32, exact even when the matmul runs in bf16)
    x_op = jnp.pad(inputx, ((0, nx_pad - Nx), (0, 0))).astype(operand_dtype)
    ys_t = jnp.pad((-2.0 * inputy.astype(jnp.float32)).T,
                   ((0, 0), (0, ny_pad - Ny))).astype(operand_dtype)
    y2 = jnp.sum(inputy.astype(jnp.float32) ** 2, axis=1)
    bias = jnp.pad(y2 - psi.astype(jnp.float32), (0, ny_pad - Ny),
                   constant_values=jnp.inf).reshape(1, ny_pad)
    x2 = jnp.pad(jnp.sum(inputx.astype(jnp.float32) ** 2, axis=1),
                 (0, nx_pad - Nx)).reshape(1, nx_pad)

    # Explicit VMEM budget (double-buffered inputs + scratch + output), with 2x
    # headroom, clamped to the v7x physical 64 MiB.
    op_bytes = jnp.dtype(operand_dtype).itemsize
    est = (2 * tm * D * op_bytes            # x tile
           + 2 * D * tn * op_bytes          # ys_t tile
           + 2 * tn * 4 + 2 * tm * 4        # bias / x2 tiles
           + tm * 128 * 4                   # acc scratch
           + 2 * tm * 4)                    # out tile
    vmem_limit = int(min(64 << 20, max(16 << 20, 2 * est)))

    grid = (nx_pad // tm, ny_pad // tn)
    out = pl.pallas_call(
        _semidual_kernel,
        out_shape=jax.ShapeDtypeStruct((1, nx_pad), jnp.float32),
        grid_spec=pltpu.PrefetchScalarGridSpec(
            num_scalar_prefetch=0,
            grid=grid,
            in_specs=[
                pl.BlockSpec((tm, D), lambda i, j: (i, 0)),   # x row tile (resident)
                pl.BlockSpec((D, tn), lambda i, j: (0, j)),   # (-2*y).T tile (pipelined)
                pl.BlockSpec((1, tn), lambda i, j: (0, j)),   # ||y||^2 - psi tile
                pl.BlockSpec((1, tm), lambda i, j: (0, i)),   # ||x||^2 tile
            ],
            out_specs=pl.BlockSpec((1, tm), lambda i, j: (0, i)),
            scratch_shapes=[pltpu.VMEM((tm, 128), jnp.float32)],
        ),
        compiler_params=pltpu.CompilerParams(
            dimension_semantics=("parallel", "arbitrary"),
            vmem_limit_bytes=vmem_limit,
        ),
    )(x_op, ys_t, bias, x2)
    return out[0, :Nx]                                        # drop padded rows


def semidual_loss(inputx, inputy, psi, patch_weights, *, tm=512, tn=1024,
                  operand_dtype=jnp.bfloat16):
    """Full semidual forward: matches the PyTorch module's non-keops branch."""
    mins = semidual_row_mins(inputx, inputy, psi, tm=tm, tn=tn,
                             operand_dtype=operand_dtype)
    reg = jnp.sum(patch_weights * psi) / jnp.sum(patch_weights)
    return jnp.mean(mins) + reg


if __name__ == "__main__":
    # Small deterministic example (non-multiples of the tiles to exercise padding).
    Nx, Ny, D = 200, 300, 32
    key = jax.random.PRNGKey(0)
    kx, ky, kp = jax.random.split(key, 3)

    inputx = jax.random.normal(kx, (Nx, D), dtype=jnp.float32)
    inputy = jax.random.normal(ky, (Ny, D), dtype=jnp.float32)
    patch_weights = jnp.ones((Ny,), dtype=jnp.float32)   # as in __init__

    def reference(x, y, psi, pw):
        cxy = (jnp.sum(x ** 2, axis=1, keepdims=True)
               + jnp.sum(y ** 2, axis=1)[None, :]
               - 2.0 * jnp.matmul(x, y.T, precision=lax.Precision.HIGHEST))
        return (jnp.mean(jnp.min(cxy - psi[None, :], axis=1))
                + jnp.sum(pw * psi) / jnp.sum(pw))

    # psi = zeros exactly as the module's __init__, plus a non-trivial psi
    # (psi is a trained nn.Parameter, so exercise the dual-variable path too).
    psi_zero = jnp.zeros((Ny,), dtype=jnp.float32)
    psi_rand = 0.1 * jax.random.normal(kp, (Ny,), dtype=jnp.float32)

    for psi in (psi_zero, psi_rand):
        ref = reference(inputx, inputy, psi, patch_weights)

        # bf16 MXU path (default), small tiles -> multiple grid steps + padding.
        loss = semidual_loss(inputx, inputy, psi, patch_weights, tm=128, tn=128)
        jax.block_until_ready(loss)
        assert jnp.allclose(loss, ref, rtol=3e-2, atol=3e-2), (loss, ref)

        # f32 operand path, tight tolerance against the HIGHEST-precision reference.
        loss32 = semidual_loss(inputx, inputy, psi, patch_weights, tm=128, tn=256,
                               operand_dtype=jnp.float32)
        jax.block_until_ready(loss32)
        assert jnp.allclose(loss32, ref, rtol=1e-3, atol=1e-3), (loss32, ref)

    # Default tile sizes / dtypes (tm auto-capped so the row axis has >= 2 tiles).
    loss = semidual_loss(inputx, inputy, psi_rand, patch_weights)
    jax.block_until_ready(loss)
    ref = reference(inputx, inputy, psi_rand, patch_weights)
    assert jnp.allclose(loss, ref, rtol=3e-2, atol=3e-2), (loss, ref)

    print("KERNEL_OK")
</pallas_src>

<mosaic_0001>
module attributes {stable_mosaic.version = 11 : i64} {
  func.func @_semidual_kernel(%arg0: i32, %arg1: i32, %arg2: memref<128x32xbf16, #tpu.memory_space<vmem>>, %arg3: memref<32x128xbf16, #tpu.memory_space<vmem>>, %arg4: memref<1x128xf32, #tpu.memory_space<vmem>>, %arg5: memref<1x128xf32, #tpu.memory_space<vmem>>, %arg6: memref<1x128xf32, #tpu.memory_space<vmem>>, %arg7: memref<128x128xf32, #tpu.memory_space<vmem>>) attributes {dimension_semantics = [#tpu.dimension_semantics<parallel>, #tpu.dimension_semantics<arbitrary>], iteration_bounds = array<i64: 2, 3>, scalar_prefetch = 0 : i64, scratch_operands = 1 : i64, tpu.core_type = #tpu.core_type<tc>, window_params = [{transform_indices = @transform_0, window_bounds = array<i64: 128, 32>}, {transform_indices = @transform_1, window_bounds = array<i64: 32, 128>}, {transform_indices = @transform_2, window_bounds = array<i64: 1, 128>}, {transform_indices = @transform_3, window_bounds = array<i64: 1, 128>}, {transform_indices = @transform_4, window_bounds = array<i64: 1, 128>}]} {
    %c0_i32 = arith.constant 0 : i32
    %0 = arith.cmpi eq, %arg1, %c0_i32 : i32
    %1 = arith.extui %0 : i1 to i32
    %c0_i32_0 = arith.constant 0 : i32
    %2 = arith.cmpi ne, %1, %c0_i32_0 : i32
    scf.if %2 {
      %cst_11 = arith.constant 0x7F800000 : f32
      %15 = vector.broadcast %cst_11 : f32 to vector<128x128xf32>
      %c0_12 = arith.constant 0 : index
      %c0_13 = arith.constant 0 : index
      %16 = vector.load %arg7[%c0_12, %c0_13] : memref<128x128xf32, #tpu.memory_space<vmem>>, vector<128x128xf32>
      tpu.vector_store %arg7[%c0_12, %c0_13], %15 {strides = array<i32>} : memref<128x128xf32, #tpu.memory_space<vmem>>, vector<128x128xf32>,
    } else {
    }
    %c0 = arith.constant 0 : index
    %c0_1 = arith.constant 0 : index
    %3 = vector.load %arg2[%c0, %c0_1] : memref<128x32xbf16, #tpu.memory_space<vmem>>, vector<128x32xbf16>
    %c0_2 = arith.constant 0 : index
    %c0_3 = arith.constant 0 : index
    %4 = vector.load %arg7[%c0_2, %c0_3] : memref<128x128xf32, #tpu.memory_space<vmem>>, vector<128x128xf32>
    %c0_4 = arith.constant 0 : index
    %c0_5 = arith.constant 0 : index
    %5 = vector.load %arg3[%c0_4, %c0_5] : memref<32x128xbf16, #tpu.memory_space<vmem>>, vector<32x128xbf16>
    %cst = arith.constant dense<0.000000e+00> : vector<128x128xf32>
    %6 = tpu.matmul %3, %5, %cst {dimension_numbers = #tpu.dot_dimension_numbers<[1], [0], [0], [1], [0, 0, 1, 1], [], []>} : vector<128x32xbf16>, vector<32x128xbf16>, vector<128x128xf32> -> vector<128x128xf32>
    %c0_6 = arith.constant 0 : index
    %c0_7 = arith.constant 0 : index
    %7 = vector.load %arg4[%c0_6, %c0_7] : memref<1x128xf32, #tpu.memory_space<vmem>>, vector<1x128xf32>
    %8 = vector.broadcast %7 : vector<1x128xf32> to vector<128x128xf32>
    %9 = arith.addf %6, %8 : vector<128x128xf32>
    %10 = arith.minimumf %4, %9 : vector<128x128xf32>
    %c0_8 = arith.constant 0 : index
    %c0_9 = arith.constant 0 : index
    %11 = vector.load %arg7[%c0_8, %c0_9] : memref<128x128xf32, #tpu.memory_space<vmem>>, vector<128x128xf32>
    tpu.vector_store %arg7[%c0_8, %c0_9], %10 {strides = array<i32>} : memref<128x128xf32, #tpu.memory_space<vmem>>, vector<128x128xf32>,
    %c2_i32 = arith.constant 2 : i32
    %12 = arith.cmpi eq, %arg1, %c2_i32 : i32
    %13 = arith.extui %12 : i1 to i32
    %c0_i32_10 = arith.constant 0 : i32
    %14 = arith.cmpi ne, %13, %c0_i32_10 : i32
    scf.if %14 {
      %c0_11 = arith.constant 0 : index
      %c0_12 = arith.constant 0 : index
      %15 = vector.load %arg7[%c0_11, %c0_12] : memref<128x128xf32, #tpu.memory_space<vmem>>, vector<128x128xf32>
      %cst_13 = arith.constant dense<0x7F800000> : vector<128xf32>
      %16 = vector.multi_reduction <minimumf>, %15, %cst_13 [1] : vector<128x128xf32> to vector<128xf32>
      %c0_14 = arith.constant 0 : index
      %c0_15 = arith.constant 0 : index
      %17 = vector.load %arg5[%c0_14, %c0_15] : memref<1x128xf32, #tpu.memory_space<vmem>>, vector<1x128xf32>
      %18 = vector.shape_cast %16 : vector<128xf32> to vector<1x128xf32>
      %19 = arith.addf %17, %18 : vector<1x128xf32>
      %c0_16 = arith.constant 0 : index
      %c0_17 = arith.constant 0 : index
      %20 = vector.load %arg6[%c0_16, %c0_17] : memref<1x128xf32, #tpu.memory_space<vmem>>, vector<1x128xf32>
      tpu.vector_store %arg6[%c0_16, %c0_17], %19 {strides = array<i32>} : memref<1x128xf32, #tpu.memory_space<vmem>>, vector<1x128xf32>,
    } else {
    }
    return
  }
  func.func @transform_0(%arg0: i32, %arg1: i32) -> (i32, i32) {
    %c0_i32 = arith.constant 0 : i32
    %c0_i32_0 = arith.constant 0 : i32
    return %arg0, %c0_i32 : i32, i32
  }
  func.func @transform_1(%arg0: i32, %arg1: i32) -> (i32, i32) {
    %c0_i32 = arith.constant 0 : i32
    %c0_i32_0 = arith.constant 0 : i32
    return %c0_i32, %arg1 : i32, i32
  }
  func.func @transform_2(%arg0: i32, %arg1: i32) -> (i32, i32) {
    %c0_i32 = arith.constant 0 : i32
    %c0_i32_0 = arith.constant 0 : i32
    return %c0_i32, %arg1 : i32, i32
  }
  func.func @transform_3(%arg0: i32, %arg1: i32) -> (i32, i32) {
    %c0_i32 = arith.constant 0 : i32
    %c0_i32_0 = arith.constant 0 : i32
    return %c0_i32, %arg0 : i32, i32
  }
  func.func @transform_4(%arg0: i32, %arg1: i32) -> (i32, i32) {
    %c0_i32 = arith.constant 0 : i32
    %c0_i32_0 = arith.constant 0 : i32
    return %c0_i32, %arg0 : i32, i32
  }
}

</mosaic_0001>

<llo_original>
// kernel: sub.1
$region0: #{sub.1}
  #allocation0 [shape = 's32[1]{0}', space=sflag, size = 0x4, scoped, tag = 'scoped memory for sub.1']
  %s0 = inlined_call_operand.vmem [shape: f32[300], index: 0, kind: input, shape index: {}]
  %s1 = inlined_call_operand.vmem [shape: f32[300], index: 1, kind: input, shape index: {}]
  %s2 = inlined_call_operand.vmem [shape: f32[300], index: 2, kind: output, shape index: {}]
  %v3 = vld [vmem:[%s0] sm:$0x7]
  %v4 = vld [vmem:[%s1] sm:$0x7]
  %5 = xla_tuple %v3, %v4
  %6 = xla_tuple %5
  %v7 = vsub.f32 %v3, %v4
  %8 = xla_tuple %v7
  %9 = vst [vmem:[%s2] sm:$0xf] %v7

// kernel: semidual_row_mins.1
$region0: #{semidual_row_mins.1}
  #allocation0 [shape = 'u32[]', space=smem, size = 0x4, offset = 0x4, fixed_abs, tag = 'smem constant byte address 0x4 - core index']
  #allocation1 [shape = 'u32[144,128]{1,0:T(1,128)}', space=vmem, size = 0x12000, scoped, tag = 'internal scratch']
  #allocation2 [shape = 'f32[128,128]{1,0:T(8,128)}', space=vmem, size = 0x10000, scoped, tag = 'scratch operand']
  %s0 = inlined_call_operand.vmem [shape: bf16[256,32], index: 0, kind: input, shape index: {}]
  %s1 = inlined_call_operand.vmem [shape: bf16[32,384], index: 1, kind: input, shape index: {}]
  %s2 = inlined_call_operand.vmem [shape: f32[1,384], index: 2, kind: input, shape index: {}]
  %s3 = inlined_call_operand.vmem [shape: f32[1,256], index: 3, kind: input, shape index: {}]
  %s4 = inlined_call_operand.hbm [shape: f32[1,256], index: 4, kind: output, shape index: {}]
  %s5 = sld [smem:[#allocation0]]
  $region98: #{semidual_row_mins.1} parent=0
    _
  %s7 = ssub.s32 1, %s5
  %s8 = scalar_select 0, %s7, %s5
  $region1: #{semidual_row_mins.1} parent=0
    #allocation3 [shape = 'u8[16384]{0}', space=vmem, size = 0x4000, scoped, tag = 'input window, operand 1']
    #allocation4 [shape = 'u8[1024]{0}', space=vmem, size = 0x400, scoped, tag = 'output window, operand 0']
    #allocation5 [shape = 's32[2]{0}', space=sflag, size = 0x8, scoped, tag = 'scoped memory for semidual_row_mins.1']
    %9 = vsyncpa [#allocation5], 0
    %s10 = scalar_lea.sflag [#allocation5], 1
    %11 = vsyncpa %s10, 0
    loop: start=0, step=1, limit=8
    $region2: #{semidual_row_mins.1} parent=1 // loop_pre_header
      _
    $region3: #{semidual_row_mins.1} parent=1 // loop_header
      %s13 = sphi 0, %s17
      %p14 = scmp.ge.s32.totalorder %s13, 8
      %s20 = sphi 0, %s32
      %s21 = sphi 0, %s28
      %s22 = sphi 0, %s20
      %s23 = sphi 0, %s21
      %s24 = sphi 0, %s22
      %s25 = sphi 0, %s23
      %s35 = sphi 0, %s37
      %s38 = sphi 0, %s35
      %s39 = sphi 0, %s38
      %s55 = sphi 0, %s39
      %s61 = sphi 0, %s63
      %s64 = sphi 0, %s61
      %s65 = sphi 0, %s64
      %s81 = sphi 0, %s65
      %s87 = sphi 0, %s89
      %s90 = sphi 0, %s87
      %s91 = sphi 0, %s90
      %s107 = sphi 0, %s91
      %s113 = sphi 0, %s115
      %s116 = sphi 0, %s113
      %s117 = sphi 0, %s116
      %s133 = sphi 0, %s117
      %s139 = sphi 0, %s141
      %s142 = sphi 0, %s139
      %s143 = sphi 0, %s142
      %s159 = sphi 0, %s143
    $region4: #{semidual_row_mins.1} parent=1 // loop_header_branch
      %16 = sbr.rel (%p14) target = $region8
    $region5: #{semidual_row_mins.1} parent=1 // loop_body
      %s18 = ssub.s32 %s13, 1
      %s19 = ssub.s32 %s13, 2
      %s26 = sadd.s32 1, %s21
      %p27 = scmp.ge.s32.totalorder %s26, 3
      %s28 = scalar_select %p27, 0, %s26
      %s29 = sadd.s32 1, %s20
      %s30 = scalar_select %p27, %s29, %s20
      %p31 = scmp.ge.s32.totalorder %s30, 2
      %s32 = scalar_select %p31, 0, %s30
      %s33 = ssub.s32 %s20, %s32
      %p34 = scmp.eq.s32.totalorder %s33, 0
      %s36 = sadd.s32 %s35, 1
      %s37 = scalar_select %p34, %s35, %s36
      %p40 = pneg %p34
      %p41 = scmp.eq.s32.totalorder %s13, 5
      %p42 = por %p40, %p41
      %p43 = scmp.ne.s32.totalorder %s35, %s38
      %p44 = scmp.eq.s32.totalorder %s13, 0
      %p45 = por %p43, %p44
      %p46 = scmp.ne.s32.totalorder %s35, %s38
      %p47 = scmp.eq.s32.totalorder %s18, 5
      %p48 = por %p46, %p47
      %p49 = scmp.ne.s32.totalorder %s38, %s39
      %p50 = scmp.eq.s32.totalorder %s18, 0
      %p51 = por %p49, %p50
      %p52 = scmp.ne.s32.totalorder %s38, %s39
      %p53 = scmp.eq.s32.totalorder %s19, 5
      %p54 = por %p52, %p53
      %p56 = scmp.ne.s32.totalorder %s39, %s55
      %p57 = scmp.eq.s32.totalorder %s19, 0
      %p58 = por %p56, %p57
      %s59 = ssub.s32 %s21, %s28
      %p60 = scmp.eq.s32.totalorder %s59, 0
      %s62 = sadd.s32 %s61, 1
      %s63 = scalar_select %p60, %s61, %s62
      %p66 = pneg %p60
      %p67 = scmp.eq.s32.totalorder %s13, 5
      %p68 = por %p66, %p67
      %p69 = scmp.ne.s32.totalorder %s61, %s64
      %p70 = scmp.eq.s32.totalorder %s13, 0
      %p71 = por %p69, %p70
      %p72 = scmp.ne.s32.totalorder %s61, %s64
      %p73 = scmp.eq.s32.totalorder %s18, 5
      %p74 = por %p72, %p73
      %p75 = scmp.ne.s32.totalorder %s64, %s65
      %p76 = scmp.eq.s32.totalorder %s18, 0
      %p77 = por %p75, %p76
      %p78 = scmp.ne.s32.totalorder %s64, %s65
      %p79 = scmp.eq.s32.totalorder %s19, 5
      %p80 = por %p78, %p79
      %p82 = scmp.ne.s32.totalorder %s65, %s81
      %p83 = scmp.eq.s32.totalorder %s19, 0
      %p84 = por %p82, %p83
      %s85 = ssub.s32 %s21, %s28
      %p86 = scmp.eq.s32.totalorder %s85, 0
      %s88 = sadd.s32 %s87, 1
      %s89 = scalar_select %p86, %s87, %s88
      %p92 = pneg %p86
      %p93 = scmp.eq.s32.totalorder %s13, 5
      %p94 = por %p92, %p93
      %p95 = scmp.ne.s32.totalorder %s87, %s90
      %p96 = scmp.eq.s32.totalorder %s13, 0
      %p97 = por %p95, %p96
      %p98 = scmp.ne.s32.totalorder %s87, %s90
      %p99 = scmp.eq.s32.totalorder %s18, 5
      %p100 = por %p98, %p99
      %p101 = scmp.ne.s32.totalorder %s90, %s91
      %p102 = scmp.eq.s32.totalorder %s18, 0
      %p103 = por %p101, %p102
      %p104 = scmp.ne.s32.totalorder %s90, %s91
      %p105 = scmp.eq.s32.totalorder %s19, 5
      %p106 = por %p104, %p105
      %p108 = scmp.ne.s32.totalorder %s91, %s107
      %p109 = scmp.eq.s32.totalorder %s19, 0
      %p110 = por %p108, %p109
      %s111 = ssub.s32 %s20, %s32
      %p112 = scmp.eq.s32.totalorder %s111, 0
      %s114 = sadd.s32 %s113, 1
      %s115 = scalar_select %p112, %s113, %s114
      %p118 = pneg %p112
      %p119 = scmp.eq.s32.totalorder %s13, 5
      %p120 = por %p118, %p119
      %p121 = scmp.ne.s32.totalorder %s113, %s116
      %p122 = scmp.eq.s32.totalorder %s13, 0
      %p123 = por %p121, %p122
      %p124 = scmp.ne.s32.totalorder %s113, %s116
      %p125 = scmp.eq.s32.totalorder %s18, 5
      %p126 = por %p124, %p125
      %p127 = scmp.ne.s32.totalorder %s116, %s117
      %p128 = scmp.eq.s32.totalorder %s18, 0
      %p129 = por %p127, %p128
      %p130 = scmp.ne.s32.totalorder %s116, %s117
      %p131 = scmp.eq.s32.totalorder %s19, 5
      %p132 = por %p130, %p131
      %p134 = scmp.ne.s32.totalorder %s117, %s133
      %p135 = scmp.eq.s32.totalorder %s19, 0
      %p136 = por %p134, %p135
      %s137 = ssub.s32 %s20, %s32
      %p138 = scmp.eq.s32.totalorder %s137, 0
      %s140 = sadd.s32 %s139, 1
      %s141 = scalar_select %p138, %s139, %s140
      %p144 = pneg %p138
      %p145 = scmp.eq.s32.totalorder %s13, 5
      %p146 = por %p144, %p145
      %p147 = scmp.ne.s32.totalorder %s139, %s142
      %p148 = scmp.eq.s32.totalorder %s13, 0
      %p149 = por %p147, %p148
      %p150 = scmp.ne.s32.totalorder %s139, %s142
      %p151 = scmp.eq.s32.totalorder %s18, 5
      %p152 = por %p150, %p151
      %p153 = scmp.ne.s32.totalorder %s142, %s143
      %p154 = scmp.eq.s32.totalorder %s18, 0
      %p155 = por %p153, %p154
      %p156 = scmp.ne.s32.totalorder %s142, %s143
      %p157 = scmp.eq.s32.totalorder %s19, 5
      %p158 = por %p156, %p157
      %p160 = scmp.ne.s32.totalorder %s143, %s159
      %p161 = scmp.eq.s32.totalorder %s19, 0
      %p162 = por %p160, %p161
      %p163 = scmp.le.s32.totalorder 1, %s13
      %p164 = scmp.lt.s32.totalorder %s13, 7
      %p165 = pnand %p163, %p164
      %p166 = pneg %p165
      // Predicated region
      $region9: #{semidual_row_mins.1} parent=5 // pred_check
        _
      $region10: #{semidual_row_mins.1} parent=5 // pred_check_branch
        %168 = sbr.rel (%p165) target = $region12
      $region11: #{semidual_row_mins.1} parent=5 // pred_region
        %s169 = ssub.s32 %s13, 1
      $region12: #{semidual_row_mins.1} parent=5 // pred_fallthru
        _
      %p170 = scmp.lt.s32.totalorder %s13, 6
      // Predicated region
      $region13: #{semidual_row_mins.1} parent=5 // pred_check
        %p171 = pneg %p170
      $region14: #{semidual_row_mins.1} parent=5 // pred_check_branch
        %173 = sbr.rel (%p171) target = $region16
      $region15: #{semidual_row_mins.1} parent=5 // pred_region
        // Predicated region
        $region17: #{semidual_row_mins.1} parent=15 // pred_check
          %p174 = pneg %p45
        $region18: #{semidual_row_mins.1} parent=15 // pred_check_branch
          %176 = sbr.rel (%p174) target = $region20
        $region19: #{semidual_row_mins.1} parent=15 // pred_region
          %s177 = smul.u32 16, %s20
          %p178 = scmp.lt.s32.totalorder %s177, 31
          %s179 = scalar_select %p178, %s177, 31
          %s180 = smul.addr %s179, 4
          %s181 = scalar_lea.vmem %s0, %s180
          %s182 = smul.u32 16, %s20
        $region20: #{semidual_row_mins.1} parent=15 // pred_fallthru
          _
        // Predicated region
        $region21: #{semidual_row_mins.1} parent=15 // pred_check
          %p183 = pneg %p71
        $region22: #{semidual_row_mins.1} parent=15 // pred_check_branch
          %185 = sbr.rel (%p183) target = $region24
        $region23: #{semidual_row_mins.1} parent=15 // pred_region
          %s186 = sand.u32 %s61, 1
          %s187 = sand.u32 %s61, 1
          %s188 = smul.addr %s187, 16
          %s189 = scalar_lea.vmem [#allocation3], %s188
          %s190 = smul.addr %s21, 4
          %s191 = scalar_lea.vmem %s1, %s190
          // Predicated region
          $region25: #{semidual_row_mins.1} parent=23 // pred_check
            _
          $region26: #{semidual_row_mins.1} parent=23 // pred_check_branch
            %193 = sbr.rel (0) target = $region28
          $region27: #{semidual_row_mins.1} parent=23 // pred_region
            // Predicated region
            $region29: #{semidual_row_mins.1} parent=27 // pred_check
              _
            $region30: #{semidual_row_mins.1} parent=27 // pred_check_branch
              %195 = sbr.rel target = $region32
            $region31: #{semidual_row_mins.1} parent=27 // pred_region
              // Predicated region
              $region44: #{semidual_row_mins.1} parent=31 // pred_check
                _
              $region45: #{semidual_row_mins.1} parent=31 // pred_check_branch
                %216 = sbr.rel (0) target = $region47
              $region46: #{semidual_row_mins.1} parent=31 // pred_region
                loop: start=0, step=1, limit=1
                $region48: #{semidual_row_mins.1} parent=46 // loop_pre_header
                  _
                $region49: #{semidual_row_mins.1} parent=46 // loop_header
                  %s218 = sphi 0, %s222
                  %p219 = scmp.ge.s32.totalorder %s218, 1
                  %s223 = sphi %s191, %s191
                  %s224 = sphi %s189, %s189
                $region50: #{semidual_row_mins.1} parent=46 // loop_header_branch
                  %221 = sbr.rel (%p219) target = $region54
                $region51: #{semidual_row_mins.1} parent=46 // loop_body
                  _
                $region52: #{semidual_row_mins.1} parent=46 // loop_footer
                  %s222 = sadd.s32 1, %s218
                $region53: #{semidual_row_mins.1} parent=46 // loop_footer_branch
                  %217 = sbr.rel target = $region49
                $region54: #{semidual_row_mins.1} parent=46 // loop_exit
                  _
                loop: start=0, step=1, limit=1
                $region55: #{semidual_row_mins.1} parent=46 // loop_pre_header
                  _
                $region56: #{semidual_row_mins.1} parent=46 // loop_header
                  %s227 = sphi 0, %s231
                  %p228 = scmp.ge.s32.totalorder %s227, 1
                  %s232 = sphi %s191, %s191
                  %s233 = sphi %s189, %s189
                $region57: #{semidual_row_mins.1} parent=46 // loop_header_branch
                  %230 = sbr.rel (%p228) target = $region61
                $region58: #{semidual_row_mins.1} parent=46 // loop_body
                  %v234 = vld [vmem:[%s232] sm:$0xf]
                  %235 = vst [vmem:[%s233] sm:$0xf] %v234
                  %v236 = vld [vmem:[%s232 + $0xc] sm:$0xf]
                  %237 = vst [vmem:[%s233 + $0x4] sm:$0xf] %v236
                  %v238 = vld [vmem:[%s232 + $0x18] sm:$0xf]
                  %239 = vst [vmem:[%s233 + $0x8] sm:$0xf] %v238
                  %v240 = vld [vmem:[%s232 + $0x24] sm:$0xf]
                  %241 = vst [vmem:[%s233 + $0xc] sm:$0xf] %v240
                $region59: #{semidual_row_mins.1} parent=46 // loop_footer
                  %s231 = sadd.s32 1, %s227
                $region60: #{semidual_row_mins.1} parent=46 // loop_footer_branch
                  %226 = sbr.rel target = $region56
                $region61: #{semidual_row_mins.1} parent=46 // loop_exit
                  _
              $region47: #{semidual_row_mins.1} parent=31 // pred_fallthru
                _
            $region32: #{semidual_row_mins.1} parent=27 // pred_fallthru
              _
            // Predicated region
            $region33: #{semidual_row_mins.1} parent=27 // pred_check
              _
            $region34: #{semidual_row_mins.1} parent=27 // pred_check_branch
              %197 = sbr.rel (0) target = $region36
            $region35: #{semidual_row_mins.1} parent=27 // pred_region
              loop: start=0, step=1, limit=1
              $region37: #{semidual_row_mins.1} parent=35 // loop_pre_header
                _
              $region38: #{semidual_row_mins.1} parent=35 // loop_header
                %s200 = sphi 0, %s204
                %p201 = scmp.ge.s32.totalorder %s200, 1
                %s205 = sphi %s191, %s191
                %s206 = sphi %s189, %s189
              $region39: #{semidual_row_mins.1} parent=35 // loop_header_branch
                %203 = sbr.rel (%p201) target = $region43
              $region40: #{semidual_row_mins.1} parent=35 // loop_body
                %v207 = vld [vmem:[%s205] sm:$0xf]
                %208 = vst [vmem:[%s206] sm:$0xf] %v207
                %v209 = vld [vmem:[%s205 + $0xc] sm:$0xf]
                %210 = vst [vmem:[%s206 + $0x4] sm:$0xf] %v209
                %v211 = vld [vmem:[%s205 + $0x18] sm:$0xf]
                %212 = vst [vmem:[%s206 + $0x8] sm:$0xf] %v211
                %v213 = vld [vmem:[%s205 + $0x24] sm:$0xf]
                %214 = vst [vmem:[%s206 + $0xc] sm:$0xf] %v213
              $region41: #{semidual_row_mins.1} parent=35 // loop_footer
                %s204 = sadd.s32 1, %s200
              $region42: #{semidual_row_mins.1} parent=35 // loop_footer_branch
                %199 = sbr.rel target = $region38
              $region43: #{semidual_row_mins.1} parent=35 // loop_exit
                _
            $region36: #{semidual_row_mins.1} parent=27 // pred_fallthru
              _
          $region28: #{semidual_row_mins.1} parent=23 // pred_fallthru
            _
          %242 = vnop
        $region24: #{semidual_row_mins.1} parent=15 // pred_fallthru
          _
        // Predicated region
        $region62: #{semidual_row_mins.1} parent=15 // pred_check
          %p243 = pneg %p97
        $region63: #{semidual_row_mins.1} parent=15 // pred_check_branch
          %245 = sbr.rel (%p243) target = $region65
        $region64: #{semidual_row_mins.1} parent=15 // pred_region
          %p246 = scmp.lt.s32.totalorder %s21, 2
          %s247 = scalar_select %p246, %s21, 2
          %s248 = scalar_lea.vmem %s2, %s247
        $region65: #{semidual_row_mins.1} parent=15 // pred_fallthru
          _
        // Predicated region
        $region66: #{semidual_row_mins.1} parent=15 // pred_check
          %p249 = pneg %p123
        $region67: #{semidual_row_mins.1} parent=15 // pred_check_branch
          %251 = sbr.rel (%p249) target = $region69
        $region68: #{semidual_row_mins.1} parent=15 // pred_region
          %p252 = scmp.lt.s32.totalorder %s20, 1
          %s253 = scalar_select %p252, %s20, 1
          %s254 = scalar_lea.vmem %s3, %s253
        $region69: #{semidual_row_mins.1} parent=15 // pred_fallthru
          _
      $region16: #{semidual_row_mins.1} parent=5 // pred_fallthru
        _
      %p255 = scmp.le.s32.totalorder 1, %s13
      %p256 = scmp.lt.s32.totalorder %s13, 7
      %p257 = pnand %p255, %p256
      %p258 = pneg %p257
      // Predicated region
      $region70: #{semidual_row_mins.1} parent=5 // pred_check
        _
      $region71: #{semidual_row_mins.1} parent=5 // pred_check_branch
        %260 = sbr.rel (%p257) target = $region73
      $region72: #{semidual_row_mins.1} parent=5 // pred_region
        %s261 = ssub.s32 %s13, 1
        %s262 = sand.u32 %s64, 1
        %s263 = sand.u32 %s64, 1
        %s264 = smul.addr %s263, 16
        %s265 = scalar_lea.vmem [#allocation3], %s264
        // Predicated region
        $region74: #{semidual_row_mins.1} parent=72 // pred_check
          %p266 = pneg %p77
        $region75: #{semidual_row_mins.1} parent=72 // pred_check_branch
          %268 = sbr.rel (%p266) target = $region77
        $region76: #{semidual_row_mins.1} parent=72 // pred_region
          _
        $region77: #{semidual_row_mins.1} parent=72 // pred_fallthru
          _
        %s269 = smul.u32 16, %s22
        %p270 = scmp.lt.s32.totalorder %s269, 31
        %s271 = scalar_select %p270, %s269, 31
        %s272 = smul.addr %s271, 4
        %s273 = scalar_lea.vmem %s0, %s272
        %p274 = pneg %p51
        %p275 = pneg %p48
        %s276 = sand.u32 %s64, 1
        %s277 = sand.u32 %s64, 1
        %s278 = smul.addr %s277, 16
        %s279 = scalar_lea.vmem [#allocation3], %s278
        %p280 = pneg %p77
        %p281 = pneg %p74
        %p282 = scmp.lt.s32.totalorder %s23, 2
        %s283 = scalar_select %p282, %s23, 2
        %s284 = scalar_lea.vmem %s2, %s283
        %p285 = pneg %p103
        %p286 = pneg %p100
        %p287 = scmp.lt.s32.totalorder %s22, 1
        %s288 = scalar_select %p287, %s22, 1
        %s289 = scalar_lea.vmem %s3, %s288
        %p290 = pneg %p129
        %p291 = pneg %p126
        %p292 = pneg %p155
        %p293 = pneg %p152
        %s294 = sand.u32 %s142, 1
        %s295 = scalar_lea.sflag [#allocation5], %s294
        %s296 = sand.u32 %s142, 1
        %s297 = scalar_lea.vmem [#allocation4], %s296
        %s298 = smul.u32 16, %s22
        %p299 = scmp.lt.s32.totalorder %s298, 31
        %s300 = scalar_select %p299, %s298, 31
        %s301 = smul.addr %s300, 4
        %s302 = scalar_lea.vmem %s0, %s301
        %s303 = smul.u32 16, %s22
        %p304 = scmp.lt.s32.totalorder %s23, 2
        %s305 = scalar_select %p304, %s23, 2
        %s306 = scalar_lea.vmem %s2, %s305
        %p307 = scmp.lt.s32.totalorder %s22, 1
        %s308 = scalar_select %p307, %s22, 1
        %s309 = scalar_lea.vmem %s3, %s308
        %p311 = scmp.eq.s32.totalorder %s23, 0
        // Predicated region
        $region78: #{semidual_row_mins.1} parent=72 // pred_check
          %p312 = pneg %p311
        $region79: #{semidual_row_mins.1} parent=72 // pred_check_branch
          %314 = sbr.rel (%p312) target = $region81
        $region80: #{semidual_row_mins.1} parent=72 // pred_region
          %315 = vst [vmem:[#allocation2] sm:$0xff] inf
          %316 = vst [vmem:[#allocation2 + $0x8] sm:$0xff] inf
          %317 = vst [vmem:[#allocation2 + $0x10] sm:$0xff] inf
          %318 = vst [vmem:[#allocation2 + $0x18] sm:$0xff] inf
          %319 = vst [vmem:[#allocation2 + $0x20] sm:$0xff] inf
          %320 = vst [vmem:[#allocation2 + $0x28] sm:$0xff] inf
          %321 = vst [vmem:[#allocation2 + $0x30] sm:$0xff] inf
          %322 = vst [vmem:[#allocation2 + $0x38] sm:$0xff] inf
          %323 = vst [vmem:[#allocation2 + $0x40] sm:$0xff] inf
          %324 = vst [vmem:[#allocation2 + $0x48] sm:$0xff] inf
          %325 = vst [vmem:[#allocation2 + $0x50] sm:$0xff] inf
          %326 = vst [vmem:[#allocation2 + $0x58] sm:$0xff] inf
          %327 = vst [vmem:[#allocation2 + $0x60] sm:$0xff] inf
          %328 = vst [vmem:[#allocation2 + $0x68] sm:$0xff] inf
          %329 = vst [vmem:[#allocation2 + $0x70] sm:$0xff] inf
          %330 = vst [vmem:[#allocation2 + $0x78] sm:$0xff] inf
        $region81: #{semidual_row_mins.1} parent=72 // pred_fallthru
          _
        %v331 = vld [vmem:[%s302] sm:$0xf]
        %v332 = vld [vmem:[%s302 + $0x4] sm:$0xf]
        %v333 = vld [vmem:[%s302 + $0x8] sm:$0xf]
        %v334 = vld [vmem:[%s302 + $0xc] sm:$0xf]
        %v335 = vld [vmem:[%s302 + $0x10] sm:$0xf]
        %v336 = vld [vmem:[%s302 + $0x14] sm:$0xf]
        %v337 = vld [vmem:[%s302 + $0x18] sm:$0xf]
        %v338 = vld [vmem:[%s302 + $0x1c] sm:$0xf]
        %v339 = vld [vmem:[%s302 + $0x20] sm:$0xf]
        %v340 = vld [vmem:[%s302 + $0x24] sm:$0xf]
        %v341 = vld [vmem:[%s302 + $0x28] sm:$0xf]
        %v342 = vld [vmem:[%s302 + $0x2c] sm:$0xf]
        %v343 = vld [vmem:[%s302 + $0x30] sm:$0xf]
        %v344 = vld [vmem:[%s302 + $0x34] sm:$0xf]
        %v345 = vld [vmem:[%s302 + $0x38] sm:$0xf]
        %v346 = vld [vmem:[%s302 + $0x3c] sm:$0xf]
        %v347 = vld [vmem:[#allocation2] sm:$0xff]
        %v348 = vld [vmem:[#allocation2 + $0x8] sm:$0xff]
        %v349 = vld [vmem:[#allocation2 + $0x10] sm:$0xff]
        %v350 = vld [vmem:[#allocation2 + $0x18] sm:$0xff]
        %v351 = vld [vmem:[#allocation2 + $0x20] sm:$0xff]
        %v352 = vld [vmem:[#allocation2 + $0x28] sm:$0xff]
        %v353 = vld [vmem:[#allocation2 + $0x30] sm:$0xff]
        %v354 = vld [vmem:[#allocation2 + $0x38] sm:$0xff]
        %v355 = vld [vmem:[#allocation2 + $0x40] sm:$0xff]
        %v356 = vld [vmem:[#allocation2 + $0x48] sm:$0xff]
        %v357 = vld [vmem:[#allocation2 + $0x50] sm:$0xff]
        %v358 = vld [vmem:[#allocation2 + $0x58] sm:$0xff]
        %v359 = vld [vmem:[#allocation2 + $0x60] sm:$0xff]
        %v360 = vld [vmem:[#allocation2 + $0x68] sm:$0xff]
        %v361 = vld [vmem:[#allocation2 + $0x70] sm:$0xff]
        %v362 = vld [vmem:[#allocation2 + $0x78] sm:$0xff]
        %v363 = vld [vmem:[%s265] sm:$0xf]
        %v364 = vld [vmem:[%s265 + $0x4] sm:$0xf]
        %v365 = vld [vmem:[%s265 + $0x8] sm:$0xf]
        %v366 = vld [vmem:[%s265 + $0xc] sm:$0xf]
        %v367 = vld [vmem:[%s306] sm:$0x1]
        %v369 = vlaneseq
        %v370 = vshrl.u32 %v369, 7
        %v371 = vsub.s32 0, %v370
        %v372 = vrot.slane %v367, %v371
        %v390 = vunpack.c.l.b16 %v331
        %v391 = vunpack.c.l.b16 %v332
        %v392 = vunpack.c.l.b16 %v333
        %v393 = vunpack.c.l.b16 %v334
        %v394 = vunpack.c.l.b16 %v335
        %v395 = vunpack.c.l.b16 %v336
        %v396 = vunpack.c.l.b16 %v337
        %v397 = vunpack.c.l.b16 %v338
        %v398 = vunpack.c.l.b16 %v339
        %v399 = vunpack.c.l.b16 %v340
        %v400 = vunpack.c.l.b16 %v341
        %v401 = vunpack.c.l.b16 %v342
        %v402 = vunpack.c.l.b16 %v343
        %v403 = vunpack.c.l.b16 %v344
        %v404 = vunpack.c.l.b16 %v345
        %v405 = vunpack.c.l.b16 %v346
        %v406 = vpack.c.b16 %v391, %v390
        %v407 = vpack.c.b16 %v393, %v392
        %v408 = vpack.c.b16 %v395, %v394
        %v409 = vpack.c.b16 %v397, %v396
        %v410 = vpack.c.b16 %v399, %v398
        %v411 = vpack.c.b16 %v401, %v400
        %v412 = vpack.c.b16 %v403, %v402
        %v413 = vpack.c.b16 %v405, %v404
        %v418 = vunpack.c.l.b16 %v363
        %v419 = vunpack.c.l.b16 %v364
        %v420 = vunpack.c.l.b16 %v365
        %v421 = vunpack.c.l.b16 %v366
        %v422 = vpack.c.b16 %v419, %v418
        %v423 = vpack.c.b16 %v421, %v420
        %vm426 = vcmask 261120
        %v428 = vsel %vm426, %v406, 0
        %v431 = vsel %vm426, %v407, 0
        %v434 = vsel %vm426, %v408, 0
        %v437 = vsel %vm426, %v409, 0
        %v440 = vsel %vm426, %v410, 0
        %v443 = vsel %vm426, %v411, 0
        %v446 = vsel %vm426, %v412, 0
        %v449 = vsel %vm426, %v413, 0
        %451 = vmatprep.subr.bf16.mxu0 0
        %452 = vmatpush1.bf16.msra.mxu0 %v422
        %453 = vmatprep.subr.bf16.mxu0 0
        %454 = vmatpush1.bf16.msra.mxu0 %v423
        %455 = vmatprep.subr.bf16.mxu0 0
        %456 = vmatpush1.bf16.msra.mxu0 0
        %457 = vmatprep.subr.bf16.mxu0 0
        %458 = vmatpush1.bf16.msra.mxu0 0
        %459 = vmatprep.subr.bf16.mxu0 0
        %460 = vmatpush1.bf16.msra.mxu0 0
        %461 = vmatprep.subr.bf16.mxu0 0
        %462 = vmatpush1.bf16.msra.mxu0 0
        %463 = vmatprep.subr.bf16.mxu0 0
        %464 = vmatpush1.bf16.msra.mxu0 0
        %465 = vmatprep.subr.bf16.mxu0 0
        %466 = vmatpush1.bf16.msra.mxu0 0
        %467 = vmatprep.subr.bf16.mxu0 0
        %468 = vmatpush1.bf16.msra.mxu0 0
        %469 = vmatprep.subr.bf16.mxu0 0
        %470 = vmatpush1.bf16.msra.mxu0 0
        %471 = vmatprep.subr.bf16.mxu0 0
        %472 = vmatpush1.bf16.msra.mxu0 0
        %473 = vmatprep.subr.bf16.mxu0 0
        %474 = vmatpush1.bf16.msra.mxu0 0
        %475 = vmatprep.subr.bf16.mxu0 0
        %476 = vmatpush1.bf16.msra.mxu0 0
        %477 = vmatprep.subr.bf16.mxu0 0
        %478 = vmatpush1.bf16.msra.mxu0 0
        %479 = vmatprep.subr.bf16.mxu0 0
        %480 = vmatpush1.bf16.msra.mxu0 0
        %481 = vmatprep.subr.bf16.mxu0 0
        %482 = vmatpush1.bf16.msra.mxu0 0
        %483 = vmatprep.mubr.bf16.mxu0 0
        %484 = vmatmul.mubr.bf16.gmra.mrb[0].mxu0 %v428
        %v485 = vpop.f32.mrb[0].mxu0
        %v486 = vadd.f32 %v372, %v485
        %v487 = vpop.f32.mrb[0].mxu0
        %v488 = vpop.f32.mrb[0].mxu0
        %v489 = vadd.f32 %v372, %v488
        %v490 = vpop.f32.mrb[0].mxu0
        %491 = vmatprep.mubr.bf16.mxu0 0
        %492 = vmatmul.mubr.bf16.gmra.mrb[0].mxu0 %v431
        %v493 = vpop.f32.mrb[0].mxu0
        %v494 = vadd.f32 %v372, %v493
        %v495 = vpop.f32.mrb[0].mxu0
        %v496 = vpop.f32.mrb[0].mxu0
        %v497 = vadd.f32 %v372, %v496
        %v498 = vpop.f32.mrb[0].mxu0
        %499 = vmatprep.mubr.bf16.mxu0 0
        %500 = vmatmul.mubr.bf16.gmra.mrb[0].mxu0 %v434
        %v501 = vpop.f32.mrb[0].mxu0
        %v502 = vadd.f32 %v372, %v501
        %v503 = vpop.f32.mrb[0].mxu0
        %v504 = vpop.f32.mrb[0].mxu0
        %v505 = vadd.f32 %v372, %v504
        %v506 = vpop.f32.mrb[0].mxu0
        %507 = vmatprep.mubr.bf16.mxu0 0
        %508 = vmatmul.mubr.bf16.gmra.mrb[0].mxu0 %v437
        %v509 = vpop.f32.mrb[0].mxu0
        %v510 = vadd.f32 %v372, %v509
        %v511 = vpop.f32.mrb[0].mxu0
        %v512 = vpop.f32.mrb[0].mxu0
        %v513 = vadd.f32 %v372, %v512
        %v514 = vpop.f32.mrb[0].mxu0
        %515 = vmatprep.mubr.bf16.mxu0 0
        %516 = vmatmul.mubr.bf16.gmra.mrb[0].mxu0 %v440
        %v517 = vpop.f32.mrb[0].mxu0
        %v518 = vadd.f32 %v372, %v517
        %v519 = vpop.f32.mrb[0].mxu0
        %v520 = vpop.f32.mrb[0].mxu0
        %v521 = vadd.f32 %v372, %v520
        %v522 = vpop.f32.mrb[0].mxu0
        %523 = vmatprep.mubr.bf16.mxu0 0
        %524 = vmatmul.mubr.bf16.gmra.mrb[0].mxu0 %v443
        %v525 = vpop.f32.mrb[0].mxu0
        %v526 = vadd.f32 %v372, %v525
        %v527 = vpop.f32.mrb[0].mxu0
        %v528 = vpop.f32.mrb[0].mxu0
        %v529 = vadd.f32 %v372, %v528
        %v530 = vpop.f32.mrb[0].mxu0
        %531 = vmatprep.mubr.bf16.mxu0 0
        %532 = vmatmul.mubr.bf16.gmra.mrb[0].mxu0 %v446
        %v533 = vpop.f32.mrb[0].mxu0
        %v534 = vadd.f32 %v372, %v533
        %v535 = vpop.f32.mrb[0].mxu0
        %v536 = vpop.f32.mrb[0].mxu0
        %v537 = vadd.f32 %v372, %v536
        %v538 = vpop.f32.mrb[0].mxu0
        %539 = vmatprep.mubr.bf16.mxu0 0
        %540 = vmatmul.mubr.bf16.gmra.mrb[0].mxu0 %v449
        %v541 = vpop.f32.mrb[0].mxu0
        %v542 = vadd.f32 %v372, %v541
        %v543 = vpop.f32.mrb[0].mxu0
        %v544 = vpop.f32.mrb[0].mxu0
        %v545 = vadd.f32 %v372, %v544
        %v546 = vpop.f32.mrb[0].mxu0
        %547 = vdwg.mxu0
        %v548 = vmin.f32 %v347, %v486
        %v549 = vmin.f32 %v348, %v489
        %v550 = vmin.f32 %v349, %v494
        %v551 = vmin.f32 %v350, %v497
        %v552 = vmin.f32 %v351, %v502
        %v553 = vmin.f32 %v352, %v505
        %v554 = vmin.f32 %v353, %v510
        %v555 = vmin.f32 %v354, %v513
        %v556 = vmin.f32 %v355, %v518
        %v557 = vmin.f32 %v356, %v521
        %v558 = vmin.f32 %v357, %v526
        %v559 = vmin.f32 %v358, %v529
        %v560 = vmin.f32 %v359, %v534
        %v561 = vmin.f32 %v360, %v537
        %v562 = vmin.f32 %v361, %v542
        %v563 = vmin.f32 %v362, %v545
        %564 = vst [vmem:[#allocation2] sm:$0xff] %v548
        %565 = vst [vmem:[#allocation2 + $0x8] sm:$0xff] %v549
        %566 = vst [vmem:[#allocation2 + $0x10] sm:$0xff] %v550
        %567 = vst [vmem:[#allocation2 + $0x18] sm:$0xff] %v551
        %568 = vst [vmem:[#allocation2 + $0x20] sm:$0xff] %v552
        %569 = vst [vmem:[#allocation2 + $0x28] sm:$0xff] %v553
        %570 = vst [vmem:[#allocation2 + $0x30] sm:$0xff] %v554
        %571 = vst [vmem:[#allocation2 + $0x38] sm:$0xff] %v555
        %572 = vst [vmem:[#allocation2 + $0x40] sm:$0xff] %v556
        %573 = vst [vmem:[#allocation2 + $0x48] sm:$0xff] %v557
        %574 = vst [vmem:[#allocation2 + $0x50] sm:$0xff] %v558
        %575 = vst [vmem:[#allocation2 + $0x58] sm:$0xff] %v559
        %576 = vst [vmem:[#allocation2 + $0x60] sm:$0xff] %v560
        %577 = vst [vmem:[#allocation2 + $0x68] sm:$0xff] %v561
        %578 = vst [vmem:[#allocation2 + $0x70] sm:$0xff] %v562
        %579 = vst [vmem:[#allocation2 + $0x78] sm:$0xff] %v563
        %p580 = scmp.eq.s32.totalorder %s23, 2
        // Predicated region
        $region82: #{semidual_row_mins.1} parent=72 // pred_check
          %p581 = pneg %p580
        $region83: #{semidual_row_mins.1} parent=72 // pred_check_branch
          %583 = sbr.rel (%p581) target = $region85
        $region84: #{semidual_row_mins.1} parent=72 // pred_region
          %v584 = vld [vmem:[#allocation2] sm:$0xff]
          %v585 = vld [vmem:[#allocation2 + $0x8] sm:$0xff]
          %v586 = vld [vmem:[#allocation2 + $0x10] sm:$0xff]
          %v587 = vld [vmem:[#allocation2 + $0x18] sm:$0xff]
          %v588 = vld [vmem:[#allocation2 + $0x20] sm:$0xff]
          %v589 = vld [vmem:[#allocation2 + $0x28] sm:$0xff]
          %v590 = vld [vmem:[#allocation2 + $0x30] sm:$0xff]
          %v591 = vld [vmem:[#allocation2 + $0x38] sm:$0xff]
          %v592 = vld [vmem:[#allocation2 + $0x40] sm:$0xff]
          %v593 = vld [vmem:[#allocation2 + $0x48] sm:$0xff]
          %v594 = vld [vmem:[#allocation2 + $0x50] sm:$0xff]
          %v595 = vld [vmem:[#allocation2 + $0x58] sm:$0xff]
          %v596 = vld [vmem:[#allocation2 + $0x60] sm:$0xff]
          %v597 = vld [vmem:[#allocation2 + $0x68] sm:$0xff]
          %v598 = vld [vmem:[#allocation2 + $0x70] sm:$0xff]
          %v599 = vld [vmem:[#allocation2 + $0x78] sm:$0xff]
          %600 = vmin.xlane.f32.xlu0 %v584
          %v601 = vpop.xlane.xlu0 %600
          %602 = vmin.xlane.f32.xlu0 %v585
          %v603 = vpop.xlane.xlu0 %602
          %604 = vmin.xlane.f32.xlu0 %v586
          %v605 = vpop.xlane.xlu0 %604
          %606 = vmin.xlane.f32.xlu0 %v587
          %v607 = vpop.xlane.xlu0 %606
          %608 = vmin.xlane.f32.xlu0 %v588
          %v609 = vpop.xlane.xlu0 %608
          %610 = vmin.xlane.f32.xlu0 %v589
          %v611 = vpop.xlane.xlu0 %610
          %612 = vmin.xlane.f32.xlu0 %v590
          %v613 = vpop.xlane.xlu0 %612
          %614 = vmin.xlane.f32.xlu0 %v591
          %v615 = vpop.xlane.xlu0 %614
          %616 = vmin.xlane.f32.xlu0 %v592
          %v617 = vpop.xlane.xlu0 %616
          %618 = vmin.xlane.f32.xlu0 %v593
          %v619 = vpop.xlane.xlu0 %618
          %620 = vmin.xlane.f32.xlu0 %v594
          %v621 = vpop.xlane.xlu0 %620
          %622 = vmin.xlane.f32.xlu0 %v595
          %v623 = vpop.xlane.xlu0 %622
          %624 = vmin.xlane.f32.xlu0 %v596
          %v625 = vpop.xlane.xlu0 %624
          %626 = vmin.xlane.f32.xlu0 %v597
          %v627 = vpop.xlane.xlu0 %626
          %628 = vmin.xlane.f32.xlu0 %v598
          %v629 = vpop.xlane.xlu0 %628
          %630 = vmin.xlane.f32.xlu0 %v599
          %v631 = vpop.xlane.xlu0 %630
          %v632 = vld [vmem:[%s309] sm:$0x1]
          %v649 = vlaneseq
          %v650 = vshrl.u32 %v649, 7
          %v651 = vsub.s32 0, %v650
          %v652 = vrot.slane %v601, %v651
          %v653 = vlaneseq
          %v654 = vshrl.u32 %v653, 7
          %v655 = vsub.s32 1, %v654
          %v656 = vrot.slane %v601, %v655
          %v657 = vlaneseq
          %v658 = vshrl.u32 %v657, 7
          %v659 = vsub.s32 2, %v658
          %v660 = vrot.slane %v601, %v659
          %v661 = vlaneseq
          %v662 = vshrl.u32 %v661, 7
          %v663 = vsub.s32 3, %v662
          %v664 = vrot.slane %v601, %v663
          %v665 = vlaneseq
          %v666 = vshrl.u32 %v665, 7
          %v667 = vsub.s32 4, %v666
          %v668 = vrot.slane %v601, %v667
          %v669 = vlaneseq
          %v670 = vshrl.u32 %v669, 7
          %v671 = vsub.s32 5, %v670
          %v672 = vrot.slane %v601, %v671
          %v673 = vlaneseq
          %v674 = vshrl.u32 %v673, 7
          %v675 = vsub.s32 6, %v674
          %v676 = vrot.slane %v601, %v675
          %v677 = vlaneseq
          %v678 = vshrl.u32 %v677, 7
          %v679 = vsub.s32 7, %v678
          %v680 = vrot.slane %v601, %v679
          %v681 = vlaneseq
          %v682 = vshrl.u32 %v681, 7
          %v683 = vsub.s32 0, %v682
          %v684 = vrot.slane %v603, %v683
          %v685 = vlaneseq
          %v686 = vshrl.u32 %v685, 7
          %v687 = vsub.s32 1, %v686
          %v688 = vrot.slane %v603, %v687
          %v689 = vlaneseq
          %v690 = vshrl.u32 %v689, 7
          %v691 = vsub.s32 2, %v690
          %v692 = vrot.slane %v603, %v691
          %v693 = vlaneseq
          %v694 = vshrl.u32 %v693, 7
          %v695 = vsub.s32 3, %v694
          %v696 = vrot.slane %v603, %v695
          %v697 = vlaneseq
          %v698 = vshrl.u32 %v697, 7
          %v699 = vsub.s32 4, %v698
          %v700 = vrot.slane %v603, %v699
          %v701 = vlaneseq
          %v702 = vshrl.u32 %v701, 7
          %v703 = vsub.s32 5, %v702
          %v704 = vrot.slane %v603, %v703
          %v705 = vlaneseq
          %v706 = vshrl.u32 %v705, 7
          %v707 = vsub.s32 6, %v706
          %v708 = vrot.slane %v603, %v707
          %v709 = vlaneseq
          %v710 = vshrl.u32 %v709, 7
          %v711 = vsub.s32 7, %v710
          %v712 = vrot.slane %v603, %v711
          %v713 = vlaneseq
          %v714 = vshrl.u32 %v713, 7
          %v715 = vsub.s32 0, %v714
          %v716 = vrot.slane %v605, %v715
          %v717 = vlaneseq
          %v718 = vshrl.u32 %v717, 7
          %v719 = vsub.s32 1, %v718
          %v720 = vrot.slane %v605, %v719
          %v721 = vlaneseq
          %v722 = vshrl.u32 %v721, 7
          %v723 = vsub.s32 2, %v722
          %v724 = vrot.slane %v605, %v723
          %v725 = vlaneseq
          %v726 = vshrl.u32 %v725, 7
          %v727 = vsub.s32 3, %v726
          %v728 = vrot.slane %v605, %v727
          %v729 = vlaneseq
          %v730 = vshrl.u32 %v729, 7
          %v731 = vsub.s32 4, %v730
          %v732 = vrot.slane %v605, %v731
          %v733 = vlaneseq
          %v734 = vshrl.u32 %v733, 7
          %v735 = vsub.s32 5, %v734
          %v736 = vrot.slane %v605, %v735
          %v737 = vlaneseq
          %v738 = vshrl.u32 %v737, 7
          %v739 = vsub.s32 6, %v738
          %v740 = vrot.slane %v605, %v739
          %v741 = vlaneseq
          %v742 = vshrl.u32 %v741, 7
          %v743 = vsub.s32 7, %v742
          %v744 = vrot.slane %v605, %v743
          %v745 = vlaneseq
          %v746 = vshrl.u32 %v745, 7
          %v747 = vsub.s32 0, %v746
          %v748 = vrot.slane %v607, %v747
          %v749 = vlaneseq
          %v750 = vshrl.u32 %v749, 7
          %v751 = vsub.s32 1, %v750
          %v752 = vrot.slane %v607, %v751
          %v753 = vlaneseq
          %v754 = vshrl.u32 %v753, 7
          %v755 = vsub.s32 2, %v754
          %v756 = vrot.slane %v607, %v755
          %v757 = vlaneseq
          %v758 = vshrl.u32 %v757, 7
          %v759 = vsub.s32 3, %v758
          %v760 = vrot.slane %v607, %v759
          %v761 = vlaneseq
          %v762 = vshrl.u32 %v761, 7
          %v763 = vsub.s32 4, %v762
          %v764 = vrot.slane %v607, %v763
          %v765 = vlaneseq
          %v766 = vshrl.u32 %v765, 7
          %v767 = vsub.s32 5, %v766
          %v768 = vrot.slane %v607, %v767
          %v769 = vlaneseq
          %v770 = vshrl.u32 %v769, 7
          %v771 = vsub.s32 6, %v770
          %v772 = vrot.slane %v607, %v771
          %v773 = vlaneseq
          %v774 = vshrl.u32 %v773, 7
          %v775 = vsub.s32 7, %v774
          %v776 = vrot.slane %v607, %v775
          %v777 = vlaneseq
          %v778 = vshrl.u32 %v777, 7
          %v779 = vsub.s32 0, %v778
          %v780 = vrot.slane %v609, %v779
          %v781 = vlaneseq
          %v782 = vshrl.u32 %v781, 7
          %v783 = vsub.s32 1, %v782
          %v784 = vrot.slane %v609, %v783
          %v785 = vlaneseq
          %v786 = vshrl.u32 %v785, 7
          %v787 = vsub.s32 2, %v786
          %v788 = vrot.slane %v609, %v787
          %v789 = vlaneseq
          %v790 = vshrl.u32 %v789, 7
          %v791 = vsub.s32 3, %v790
          %v792 = vrot.slane %v609, %v791
          %v793 = vlaneseq
          %v794 = vshrl.u32 %v793, 7
          %v795 = vsub.s32 4, %v794
          %v796 = vrot.slane %v609, %v795
          %v797 = vlaneseq
          %v798 = vshrl.u32 %v797, 7
          %v799 = vsub.s32 5, %v798
          %v800 = vrot.slane %v609, %v799
          %v801 = vlaneseq
          %v802 = vshrl.u32 %v801, 7
          %v803 = vsub.s32 6, %v802
          %v804 = vrot.slane %v609, %v803
          %v805 = vlaneseq
          %v806 = vshrl.u32 %v805, 7
          %v807 = vsub.s32 7, %v806
          %v808 = vrot.slane %v609, %v807
          %v809 = vlaneseq
          %v810 = vshrl.u32 %v809, 7
          %v811 = vsub.s32 0, %v810
          %v812 = vrot.slane %v611, %v811
          %v813 = vlaneseq
          %v814 = vshrl.u32 %v813, 7
          %v815 = vsub.s32 1, %v814
          %v816 = vrot.slane %v611, %v815
          %v817 = vlaneseq
          %v818 = vshrl.u32 %v817, 7
          %v819 = vsub.s32 2, %v818
          %v820 = vrot.slane %v611, %v819
          %v821 = vlaneseq
          %v822 = vshrl.u32 %v821, 7
          %v823 = vsub.s32 3, %v822
          %v824 = vrot.slane %v611, %v823
          %v825 = vlaneseq
          %v826 = vshrl.u32 %v825, 7
          %v827 = vsub.s32 4, %v826
          %v828 = vrot.slane %v611, %v827
          %v829 = vlaneseq
          %v830 = vshrl.u32 %v829, 7
          %v831 = vsub.s32 5, %v830
          %v832 = vrot.slane %v611, %v831
          %v833 = vlaneseq
          %v834 = vshrl.u32 %v833, 7
          %v835 = vsub.s32 6, %v834
          %v836 = vrot.slane %v611, %v835
          %v837 = vlaneseq
          %v838 = vshrl.u32 %v837, 7
          %v839 = vsub.s32 7, %v838
          %v840 = vrot.slane %v611, %v839
          %v841 = vlaneseq
          %v842 = vshrl.u32 %v841, 7
          %v843 = vsub.s32 0, %v842
          %v844 = vrot.slane %v613, %v843
          %v845 = vlaneseq
          %v846 = vshrl.u32 %v845, 7
          %v847 = vsub.s32 1, %v846
          %v848 = vrot.slane %v613, %v847
          %v849 = vlaneseq
          %v850 = vshrl.u32 %v849, 7
          %v851 = vsub.s32 2, %v850
          %v852 = vrot.slane %v613, %v851
          %v853 = vlaneseq
          %v854 = vshrl.u32 %v853, 7
          %v855 = vsub.s32 3, %v854
          %v856 = vrot.slane %v613, %v855
          %v857 = vlaneseq
          %v858 = vshrl.u32 %v857, 7
          %v859 = vsub.s32 4, %v858
          %v860 = vrot.slane %v613, %v859
          %v861 = vlaneseq
          %v862 = vshrl.u32 %v861, 7
          %v863 = vsub.s32 5, %v862
          %v864 = vrot.slane %v613, %v863
          %v865 = vlaneseq
          %v866 = vshrl.u32 %v865, 7
          %v867 = vsub.s32 6, %v866
          %v868 = vrot.slane %v613, %v867
          %v869 = vlaneseq
          %v870 = vshrl.u32 %v869, 7
          %v871 = vsub.s32 7, %v870
          %v872 = vrot.slane %v613, %v871
          %v873 = vlaneseq
          %v874 = vshrl.u32 %v873, 7
          %v875 = vsub.s32 0, %v874
          %v876 = vrot.slane %v615, %v875
          %v877 = vlaneseq
          %v878 = vshrl.u32 %v877, 7
          %v879 = vsub.s32 1, %v878
          %v880 = vrot.slane %v615, %v879
          %v881 = vlaneseq
          %v882 = vshrl.u32 %v881, 7
          %v883 = vsub.s32 2, %v882
          %v884 = vrot.slane %v615, %v883
          %v885 = vlaneseq
          %v886 = vshrl.u32 %v885, 7
          %v887 = vsub.s32 3, %v886
          %v888 = vrot.slane %v615, %v887
          %v889 = vlaneseq
          %v890 = vshrl.u32 %v889, 7
          %v891 = vsub.s32 4, %v890
          %v892 = vrot.slane %v615, %v891
          %v893 = vlaneseq
          %v894 = vshrl.u32 %v893, 7
          %v895 = vsub.s32 5, %v894
          %v896 = vrot.slane %v615, %v895
          %v897 = vlaneseq
          %v898 = vshrl.u32 %v897, 7
          %v899 = vsub.s32 6, %v898
          %v900 = vrot.slane %v615, %v899
          %v901 = vlaneseq
          %v902 = vshrl.u32 %v901, 7
          %v903 = vsub.s32 7, %v902
          %v904 = vrot.slane %v615, %v903
          %v905 = vlaneseq
          %v906 = vshrl.u32 %v905, 7
          %v907 = vsub.s32 0, %v906
          %v908 = vrot.slane %v617, %v907
          %v909 = vlaneseq
          %v910 = vshrl.u32 %v909, 7
          %v911 = vsub.s32 1, %v910
          %v912 = vrot.slane %v617, %v911
          %v913 = vlaneseq
          %v914 = vshrl.u32 %v913, 7
          %v915 = vsub.s32 2, %v914
          %v916 = vrot.slane %v617, %v915
          %v917 = vlaneseq
          %v918 = vshrl.u32 %v917, 7
          %v919 = vsub.s32 3, %v918
          %v920 = vrot.slane %v617, %v919
          %v921 = vlaneseq
          %v922 = vshrl.u32 %v921, 7
          %v923 = vsub.s32 4, %v922
          %v924 = vrot.slane %v617, %v923
          %v925 = vlaneseq
          %v926 = vshrl.u32 %v925, 7
          %v927 = vsub.s32 5, %v926
          %v928 = vrot.slane %v617, %v927
          %v929 = vlaneseq
          %v930 = vshrl.u32 %v929, 7
          %v931 = vsub.s32 6, %v930
          %v932 = vrot.slane %v617, %v931
          %v933 = vlaneseq
          %v934 = vshrl.u32 %v933, 7
          %v935 = vsub.s32 7, %v934
          %v936 = vrot.slane %v617, %v935
          %v937 = vlaneseq
          %v938 = vshrl.u32 %v937, 7
          %v939 = vsub.s32 0, %v938
          %v940 = vrot.slane %v619, %v939
          %v941 = vlaneseq
          %v942 = vshrl.u32 %v941, 7
          %v943 = vsub.s32 1, %v942
          %v944 = vrot.slane %v619, %v943
          %v945 = vlaneseq
          %v946 = vshrl.u32 %v945, 7
          %v947 = vsub.s32 2, %v946
          %v948 = vrot.slane %v619, %v947
          %v949 = vlaneseq
          %v950 = vshrl.u32 %v949, 7
          %v951 = vsub.s32 3, %v950
          %v952 = vrot.slane %v619, %v951
          %v953 = vlaneseq
          %v954 = vshrl.u32 %v953, 7
          %v955 = vsub.s32 4, %v954
          %v956 = vrot.slane %v619, %v955
          %v957 = vlaneseq
          %v958 = vshrl.u32 %v957, 7
          %v959 = vsub.s32 5, %v958
          %v960 = vrot.slane %v619, %v959
          %v961 = vlaneseq
          %v962 = vshrl.u32 %v961, 7
          %v963 = vsub.s32 6, %v962
          %v964 = vrot.slane %v619, %v963
          %v965 = vlaneseq
          %v966 = vshrl.u32 %v965, 7
          %v967 = vsub.s32 7, %v966
          %v968 = vrot.slane %v619, %v967
          %v969 = vlaneseq
          %v970 = vshrl.u32 %v969, 7
          %v971 = vsub.s32 0, %v970
          %v972 = vrot.slane %v621, %v971
          %v973 = vlaneseq
          %v974 = vshrl.u32 %v973, 7
          %v975 = vsub.s32 1, %v974
          %v976 = vrot.slane %v621, %v975
          %v977 = vlaneseq
          %v978 = vshrl.u32 %v977, 7
          %v979 = vsub.s32 2, %v978
          %v980 = vrot.slane %v621, %v979
          %v981 = vlaneseq
          %v982 = vshrl.u32 %v981, 7
          %v983 = vsub.s32 3, %v982
          %v984 = vrot.slane %v621, %v983
          %v985 = vlaneseq
          %v986 = vshrl.u32 %v985, 7
          %v987 = vsub.s32 4, %v986
          %v988 = vrot.slane %v621, %v987
          %v989 = vlaneseq
          %v990 = vshrl.u32 %v989, 7
          %v991 = vsub.s32 5, %v990
          %v992 = vrot.slane %v621, %v991
          %v993 = vlaneseq
          %v994 = vshrl.u32 %v993, 7
          %v995 = vsub.s32 6, %v994
          %v996 = vrot.slane %v621, %v995
          %v997 = vlaneseq
          %v998 = vshrl.u32 %v997, 7
          %v999 = vsub.s32 7, %v998
          %v1000 = vrot.slane %v621, %v999
          %v1001 = vlaneseq
          %v1002 = vshrl.u32 %v1001, 7
          %v1003 = vsub.s32 0, %v1002
          %v1004 = vrot.slane %v623, %v1003
          %v1005 = vlaneseq
          %v1006 = vshrl.u32 %v1005, 7
          %v1007 = vsub.s32 1, %v1006
          %v1008 = vrot.slane %v623, %v1007
          %v1009 = vlaneseq
          %v1010 = vshrl.u32 %v1009, 7
          %v1011 = vsub.s32 2, %v1010
          %v1012 = vrot.slane %v623, %v1011
          %v1013 = vlaneseq
          %v1014 = vshrl.u32 %v1013, 7
          %v1015 = vsub.s32 3, %v1014
          %v1016 = vrot.slane %v623, %v1015
          %v1017 = vlaneseq
          %v1018 = vshrl.u32 %v1017, 7
          %v1019 = vsub.s32 4, %v1018
          %v1020 = vrot.slane %v623, %v1019
          %v1021 = vlaneseq
          %v1022 = vshrl.u32 %v1021, 7
          %v1023 = vsub.s32 5, %v1022
          %v1024 = vrot.slane %v623, %v1023
          %v1025 = vlaneseq
          %v1026 = vshrl.u32 %v1025, 7
          %v1027 = vsub.s32 6, %v1026
          %v1028 = vrot.slane %v623, %v1027
          %v1029 = vlaneseq
          %v1030 = vshrl.u32 %v1029, 7
          %v1031 = vsub.s32 7, %v1030
          %v1032 = vrot.slane %v623, %v1031
          %v1033 = vlaneseq
          %v1034 = vshrl.u32 %v1033, 7
          %v1035 = vsub.s32 0, %v1034
          %v1036 = vrot.slane %v625, %v1035
          %v1037 = vlaneseq
          %v1038 = vshrl.u32 %v1037, 7
          %v1039 = vsub.s32 1, %v1038
          %v1040 = vrot.slane %v625, %v1039
          %v1041 = vlaneseq
          %v1042 = vshrl.u32 %v1041, 7
          %v1043 = vsub.s32 2, %v1042
          %v1044 = vrot.slane %v625, %v1043
          %v1045 = vlaneseq
          %v1046 = vshrl.u32 %v1045, 7
          %v1047 = vsub.s32 3, %v1046
          %v1048 = vrot.slane %v625, %v1047
          %v1049 = vlaneseq
          %v1050 = vshrl.u32 %v1049, 7
          %v1051 = vsub.s32 4, %v1050
          %v1052 = vrot.slane %v625, %v1051
          %v1053 = vlaneseq
          %v1054 = vshrl.u32 %v1053, 7
          %v1055 = vsub.s32 5, %v1054
          %v1056 = vrot.slane %v625, %v1055
          %v1057 = vlaneseq
          %v1058 = vshrl.u32 %v1057, 7
          %v1059 = vsub.s32 6, %v1058
          %v1060 = vrot.slane %v625, %v1059
          %v1061 = vlaneseq
          %v1062 = vshrl.u32 %v1061, 7
          %v1063 = vsub.s32 7, %v1062
          %v1064 = vrot.slane %v625, %v1063
          %v1065 = vlaneseq
          %v1066 = vshrl.u32 %v1065, 7
          %v1067 = vsub.s32 0, %v1066
          %v1068 = vrot.slane %v627, %v1067
          %v1069 = vlaneseq
          %v1070 = vshrl.u32 %v1069, 7
          %v1071 = vsub.s32 1, %v1070
          %v1072 = vrot.slane %v627, %v1071
          %v1073 = vlaneseq
          %v1074 = vshrl.u32 %v1073, 7
          %v1075 = vsub.s32 2, %v1074
          %v1076 = vrot.slane %v627, %v1075
          %v1077 = vlaneseq
          %v1078 = vshrl.u32 %v1077, 7
          %v1079 = vsub.s32 3, %v1078
          %v1080 = vrot.slane %v627, %v1079
          %v1081 = vlaneseq
          %v1082 = vshrl.u32 %v1081, 7
          %v1083 = vsub.s32 4, %v1082
          %v1084 = vrot.slane %v627, %v1083
          %v1085 = vlaneseq
          %v1086 = vshrl.u32 %v1085, 7
          %v1087 = vsub.s32 5, %v1086
          %v1088 = vrot.slane %v627, %v1087
          %v1089 = vlaneseq
          %v1090 = vshrl.u32 %v1089, 7
          %v1091 = vsub.s32 6, %v1090
          %v1092 = vrot.slane %v627, %v1091
          %v1093 = vlaneseq
          %v1094 = vshrl.u32 %v1093, 7
          %v1095 = vsub.s32 7, %v1094
          %v1096 = vrot.slane %v627, %v1095
          %v1097 = vlaneseq
          %v1098 = vshrl.u32 %v1097, 7
          %v1099 = vsub.s32 0, %v1098
          %v1100 = vrot.slane %v629, %v1099
          %v1101 = vlaneseq
          %v1102 = vshrl.u32 %v1101, 7
          %v1103 = vsub.s32 1, %v1102
          %v1104 = vrot.slane %v629, %v1103
          %v1105 = vlaneseq
          %v1106 = vshrl.u32 %v1105, 7
          %v1107 = vsub.s32 2, %v1106
          %v1108 = vrot.slane %v629, %v1107
          %v1109 = vlaneseq
          %v1110 = vshrl.u32 %v1109, 7
          %v1111 = vsub.s32 3, %v1110
          %v1112 = vrot.slane %v629, %v1111
          %v1113 = vlaneseq
          %v1114 = vshrl.u32 %v1113, 7
          %v1115 = vsub.s32 4, %v1114
          %v1116 = vrot.slane %v629, %v1115
          %v1117 = vlaneseq
          %v1118 = vshrl.u32 %v1117, 7
          %v1119 = vsub.s32 5, %v1118
          %v1120 = vrot.slane %v629, %v1119
          %v1121 = vlaneseq
          %v1122 = vshrl.u32 %v1121, 7
          %v1123 = vsub.s32 6, %v1122
          %v1124 = vrot.slane %v629, %v1123
          %v1125 = vlaneseq
          %v1126 = vshrl.u32 %v1125, 7
          %v1127 = vsub.s32 7, %v1126
          %v1128 = vrot.slane %v629, %v1127
          %v1129 = vlaneseq
          %v1130 = vshrl.u32 %v1129, 7
          %v1131 = vsub.s32 0, %v1130
          %v1132 = vrot.slane %v631, %v1131
          %v1133 = vlaneseq
          %v1134 = vshrl.u32 %v1133, 7
          %v1135 = vsub.s32 1, %v1134
          %v1136 = vrot.slane %v631, %v1135
          %v1137 = vlaneseq
          %v1138 = vshrl.u32 %v1137, 7
          %v1139 = vsub.s32 2, %v1138
          %v1140 = vrot.slane %v631, %v1139
          %v1141 = vlaneseq
          %v1142 = vshrl.u32 %v1141, 7
          %v1143 = vsub.s32 3, %v1142
          %v1144 = vrot.slane %v631, %v1143
          %v1145 = vlaneseq
          %v1146 = vshrl.u32 %v1145, 7
          %v1147 = vsub.s32 4, %v1146
          %v1148 = vrot.slane %v631, %v1147
          %v1149 = vlaneseq
          %v1150 = vshrl.u32 %v1149, 7
          %v1151 = vsub.s32 5, %v1150
          %v1152 = vrot.slane %v631, %v1151
          %v1153 = vlaneseq
          %v1154 = vshrl.u32 %v1153, 7
          %v1155 = vsub.s32 6, %v1154
          %v1156 = vrot.slane %v631, %v1155
          %v1157 = vlaneseq
          %v1158 = vshrl.u32 %v1157, 7
          %v1159 = vsub.s32 7, %v1158
          %v1160 = vrot.slane %v631, %v1159
          %v1161 = vcombine.low %v652, %v656
          %v1162 = vcombine.low %v660, %v664
          %v1163 = vcombine.low %v668, %v672
          %v1164 = vcombine.low %v676, %v680
          %v1166 = vunpack.c.l.s4 1966171168
          %v1167 = vunpack.c.0.s8 %v1166
          %v1168 = vlaneseq
          %v1169 = vshrl.u32 %v1168, 7
          %v1170 = vsub.s32 %v1167, %v1169
          %v1171 = vrot.slane %v1161, %v1170
          %v1173 = vunpack.c.l.s4 1966171168
          %v1174 = vunpack.c.0.s8 %v1173
          %v1175 = vlaneseq
          %v1176 = vshrl.u32 %v1175, 7
          %v1177 = vsub.s32 %v1174, %v1176
          %v1178 = vrot.slane %v1162, %v1177
          %v1180 = vunpack.c.l.s4 1966171168
          %v1181 = vunpack.c.0.s8 %v1180
          %v1182 = vlaneseq
          %v1183 = vshrl.u32 %v1182, 7
          %v1184 = vsub.s32 %v1181, %v1183
          %v1185 = vrot.slane %v1163, %v1184
          %v1187 = vunpack.c.l.s4 1966171168
          %v1188 = vunpack.c.0.s8 %v1187
          %v1189 = vlaneseq
          %v1190 = vshrl.u32 %v1189, 7
          %v1191 = vsub.s32 %v1188, %v1190
          %v1192 = vrot.slane %v1164, %v1191
          %v1193 = vcombine.low %v1171, %v1178
          %v1194 = vcombine.low %v1185, %v1192
          %v1196 = vunpack.c.l.s4 1966171168
          %v1197 = vunpack.c.0.s8 %v1196
          %v1198 = vlaneseq
          %v1199 = vshrl.u32 %v1198, 7
          %v1200 = vsub.s32 %v1197, %v1199
          %v1201 = vrot.slane %v1193, %v1200
          %v1203 = vunpack.c.l.s4 1966171168
          %v1204 = vunpack.c.0.s8 %v1203
          %v1205 = vlaneseq
          %v1206 = vshrl.u32 %v1205, 7
          %v1207 = vsub.s32 %v1204, %v1206
          %v1208 = vrot.slane %v1194, %v1207
          %v1209 = vcombine.low %v1201, %v1208
          %v1210 = vcombine.low %v684, %v688
          %v1211 = vcombine.low %v692, %v696
          %v1212 = vcombine.low %v700, %v704
          %v1213 = vcombine.low %v708, %v712
          %v1215 = vunpack.c.l.s4 1966171168
          %v1216 = vunpack.c.0.s8 %v1215
          %v1217 = vlaneseq
          %v1218 = vshrl.u32 %v1217, 7
          %v1219 = vsub.s32 %v1216, %v1218
          %v1220 = vrot.slane %v1210, %v1219
          %v1222 = vunpack.c.l.s4 1966171168
          %v1223 = vunpack.c.0.s8 %v1222
          %v1224 = vlaneseq
          %v1225 = vshrl.u32 %v1224, 7
          %v1226 = vsub.s32 %v1223, %v1225
          %v1227 = vrot.slane %v1211, %v1226
          %v1229 = vunpack.c.l.s4 1966171168
          %v1230 = vunpack.c.0.s8 %v1229
          %v1231 = vlaneseq
          %v1232 = vshrl.u32 %v1231, 7
          %v1233 = vsub.s32 %v1230, %v1232
          %v1234 = vrot.slane %v1212, %v1233
          %v1236 = vunpack.c.l.s4 1966171168
          %v1237 = vunpack.c.0.s8 %v1236
          %v1238 = vlaneseq
          %v1239 = vshrl.u32 %v1238, 7
          %v1240 = vsub.s32 %v1237, %v1239
          %v1241 = vrot.slane %v1213, %v1240
          %v1242 = vcombine.low %v1220, %v1227
          %v1243 = vcombine.low %v1234, %v1241
          %v1245 = vunpack.c.l.s4 1966171168
          %v1246 = vunpack.c.0.s8 %v1245
          %v1247 = vlaneseq
          %v1248 = vshrl.u32 %v1247, 7
          %v1249 = vsub.s32 %v1246, %v1248
          %v1250 = vrot.slane %v1242, %v1249
          %v1252 = vunpack.c.l.s4 1966171168
          %v1253 = vunpack.c.0.s8 %v1252
          %v1254 = vlaneseq
          %v1255 = vshrl.u32 %v1254, 7
          %v1256 = vsub.s32 %v1253, %v1255
          %v1257 = vrot.slane %v1243, %v1256
          %v1258 = vcombine.low %v1250, %v1257
          %v1259 = vcombine.low %v716, %v720
          %v1260 = vcombine.low %v724, %v728
          %v1261 = vcombine.low %v732, %v736
          %v1262 = vcombine.low %v740, %v744
          %v1264 = vunpack.c.l.s4 1966171168
          %v1265 = vunpack.c.0.s8 %v1264
          %v1266 = vlaneseq
          %v1267 = vshrl.u32 %v1266, 7
          %v1268 = vsub.s32 %v1265, %v1267
          %v1269 = vrot.slane %v1259, %v1268
          %v1271 = vunpack.c.l.s4 1966171168
          %v1272 = vunpack.c.0.s8 %v1271
          %v1273 = vlaneseq
          %v1274 = vshrl.u32 %v1273, 7
          %v1275 = vsub.s32 %v1272, %v1274
          %v1276 = vrot.slane %v1260, %v1275
          %v1278 = vunpack.c.l.s4 1966171168
          %v1279 = vunpack.c.0.s8 %v1278
          %v1280 = vlaneseq
          %v1281 = vshrl.u32 %v1280, 7
          %v1282 = vsub.s32 %v1279, %v1281
          %v1283 = vrot.slane %v1261, %v1282
          %v1285 = vunpack.c.l.s4 1966171168
          %v1286 = vunpack.c.0.s8 %v1285
          %v1287 = vlaneseq
          %v1288 = vshrl.u32 %v1287, 7
          %v1289 = vsub.s32 %v1286, %v1288
          %v1290 = vrot.slane %v1262, %v1289
          %v1291 = vcombine.low %v1269, %v1276
          %v1292 = vcombine.low %v1283, %v1290
          %v1294 = vunpack.c.l.s4 1966171168
          %v1295 = vunpack.c.0.s8 %v1294
          %v1296 = vlaneseq
          %v1297 = vshrl.u32 %v1296, 7
          %v1298 = vsub.s32 %v1295, %v1297
          %v1299 = vrot.slane %v1291, %v1298
          %v1301 = vunpack.c.l.s4 1966171168
          %v1302 = vunpack.c.0.s8 %v1301
          %v1303 = vlaneseq
          %v1304 = vshrl.u32 %v1303, 7
          %v1305 = vsub.s32 %v1302, %v1304
          %v1306 = vrot.slane %v1292, %v1305
          %v1307 = vcombine.low %v1299, %v1306
          %v1308 = vcombine.low %v748, %v752
          %v1309 = vcombine.low %v756, %v760
          %v1310 = vcombine.low %v764, %v768
          %v1311 = vcombine.low %v772, %v776
          %v1313 = vunpack.c.l.s4 1966171168
          %v1314 = vunpack.c.0.s8 %v1313
          %v1315 = vlaneseq
          %v1316 = vshrl.u32 %v1315, 7
          %v1317 = vsub.s32 %v1314, %v1316
          %v1318 = vrot.slane %v1308, %v1317
          %v1320 = vunpack.c.l.s4 1966171168
          %v1321 = vunpack.c.0.s8 %v1320
          %v1322 = vlaneseq
          %v1323 = vshrl.u32 %v1322, 7
          %v1324 = vsub.s32 %v1321, %v1323
          %v1325 = vrot.slane %v1309, %v1324
          %v1327 = vunpack.c.l.s4 1966171168
          %v1328 = vunpack.c.0.s8 %v1327
          %v1329 = vlaneseq
          %v1330 = vshrl.u32 %v1329, 7
          %v1331 = vsub.s32 %v1328, %v1330
          %v1332 = vrot.slane %v1310, %v1331
          %v1334 = vunpack.c.l.s4 1966171168
          %v1335 = vunpack.c.0.s8 %v1334
          %v1336 = vlaneseq
          %v1337 = vshrl.u32 %v1336, 7
          %v1338 = vsub.s32 %v1335, %v1337
          %v1339 = vrot.slane %v1311, %v1338
          %v1340 = vcombine.low %v1318, %v1325
          %v1341 = vcombine.low %v1332, %v1339
          %v1343 = vunpack.c.l.s4 1966171168
          %v1344 = vunpack.c.0.s8 %v1343
          %v1345 = vlaneseq
          %v1346 = vshrl.u32 %v1345, 7
          %v1347 = vsub.s32 %v1344, %v1346
          %v1348 = vrot.slane %v1340, %v1347
          %v1350 = vunpack.c.l.s4 1966171168
          %v1351 = vunpack.c.0.s8 %v1350
          %v1352 = vlaneseq
          %v1353 = vshrl.u32 %v1352, 7
          %v1354 = vsub.s32 %v1351, %v1353
          %v1355 = vrot.slane %v1341, %v1354
          %v1356 = vcombine.low %v1348, %v1355
          %v1357 = vcombine.low %v780, %v784
          %v1358 = vcombine.low %v788, %v792
          %v1359 = vcombine.low %v796, %v800
          %v1360 = vcombine.low %v804, %v808
          %v1362 = vunpack.c.l.s4 1966171168
          %v1363 = vunpack.c.0.s8 %v1362
          %v1364 = vlaneseq
          %v1365 = vshrl.u32 %v1364, 7
          %v1366 = vsub.s32 %v1363, %v1365
          %v1367 = vrot.slane %v1357, %v1366
          %v1369 = vunpack.c.l.s4 1966171168
          %v1370 = vunpack.c.0.s8 %v1369
          %v1371 = vlaneseq
          %v1372 = vshrl.u32 %v1371, 7
          %v1373 = vsub.s32 %v1370, %v1372
          %v1374 = vrot.slane %v1358, %v1373
          %v1376 = vunpack.c.l.s4 1966171168
          %v1377 = vunpack.c.0.s8 %v1376
          %v1378 = vlaneseq
          %v1379 = vshrl.u32 %v1378, 7
          %v1380 = vsub.s32 %v1377, %v1379
          %v1381 = vrot.slane %v1359, %v1380
          %v1383 = vunpack.c.l.s4 1966171168
          %v1384 = vunpack.c.0.s8 %v1383
          %v1385 = vlaneseq
          %v1386 = vshrl.u32 %v1385, 7
          %v1387 = vsub.s32 %v1384, %v1386
          %v1388 = vrot.slane %v1360, %v1387
          %v1389 = vcombine.low %v1367, %v1374
          %v1390 = vcombine.low %v1381, %v1388
          %v1392 = vunpack.c.l.s4 1966171168
          %v1393 = vunpack.c.0.s8 %v1392
          %v1394 = vlaneseq
          %v1395 = vshrl.u32 %v1394, 7
          %v1396 = vsub.s32 %v1393, %v1395
          %v1397 = vrot.slane %v1389, %v1396
          %v1399 = vunpack.c.l.s4 1966171168
          %v1400 = vunpack.c.0.s8 %v1399
          %v1401 = vlaneseq
          %v1402 = vshrl.u32 %v1401, 7
          %v1403 = vsub.s32 %v1400, %v1402
          %v1404 = vrot.slane %v1390, %v1403
          %v1405 = vcombine.low %v1397, %v1404
          %v1406 = vcombine.low %v812, %v816
          %v1407 = vcombine.low %v820, %v824
          %v1408 = vcombine.low %v828, %v832
          %v1409 = vcombine.low %v836, %v840
          %v1411 = vunpack.c.l.s4 1966171168
          %v1412 = vunpack.c.0.s8 %v1411
          %v1413 = vlaneseq
          %v1414 = vshrl.u32 %v1413, 7
          %v1415 = vsub.s32 %v1412, %v1414
          %v1416 = vrot.slane %v1406, %v1415
          %v1418 = vunpack.c.l.s4 1966171168
          %v1419 = vunpack.c.0.s8 %v1418
          %v1420 = vlaneseq
          %v1421 = vshrl.u32 %v1420, 7
          %v1422 = vsub.s32 %v1419, %v1421
          %v1423 = vrot.slane %v1407, %v1422
          %v1425 = vunpack.c.l.s4 1966171168
          %v1426 = vunpack.c.0.s8 %v1425
          %v1427 = vlaneseq
          %v1428 = vshrl.u32 %v1427, 7
          %v1429 = vsub.s32 %v1426, %v1428
          %v1430 = vrot.slane %v1408, %v1429
          %v1432 = vunpack.c.l.s4 1966171168
          %v1433 = vunpack.c.0.s8 %v1432
          %v1434 = vlaneseq
          %v1435 = vshrl.u32 %v1434, 7
          %v1436 = vsub.s32 %v1433, %v1435
          %v1437 = vrot.slane %v1409, %v1436
          %v1438 = vcombine.low %v1416, %v1423
          %v1439 = vcombine.low %v1430, %v1437
          %v1441 = vunpack.c.l.s4 1966171168
          %v1442 = vunpack.c.0.s8 %v1441
          %v1443 = vlaneseq
          %v1444 = vshrl.u32 %v1443, 7
          %v1445 = vsub.s32 %v1442, %v1444
          %v1446 = vrot.slane %v1438, %v1445
          %v1448 = vunpack.c.l.s4 1966171168
          %v1449 = vunpack.c.0.s8 %v1448
          %v1450 = vlaneseq
          %v1451 = vshrl.u32 %v1450, 7
          %v1452 = vsub.s32 %v1449, %v1451
          %v1453 = vrot.slane %v1439, %v1452
          %v1454 = vcombine.low %v1446, %v1453
          %v1455 = vcombine.low %v844, %v848
          %v1456 = vcombine.low %v852, %v856
          %v1457 = vcombine.low %v860, %v864
          %v1458 = vcombine.low %v868, %v872
          %v1460 = vunpack.c.l.s4 1966171168
          %v1461 = vunpack.c.0.s8 %v1460
          %v1462 = vlaneseq
          %v1463 = vshrl.u32 %v1462, 7
          %v1464 = vsub.s32 %v1461, %v1463
          %v1465 = vrot.slane %v1455, %v1464
          %v1467 = vunpack.c.l.s4 1966171168
          %v1468 = vunpack.c.0.s8 %v1467
          %v1469 = vlaneseq
          %v1470 = vshrl.u32 %v1469, 7
          %v1471 = vsub.s32 %v1468, %v1470
          %v1472 = vrot.slane %v1456, %v1471
          %v1474 = vunpack.c.l.s4 1966171168
          %v1475 = vunpack.c.0.s8 %v1474
          %v1476 = vlaneseq
          %v1477 = vshrl.u32 %v1476, 7
          %v1478 = vsub.s32 %v1475, %v1477
          %v1479 = vrot.slane %v1457, %v1478
          %v1481 = vunpack.c.l.s4 1966171168
          %v1482 = vunpack.c.0.s8 %v1481
          %v1483 = vlaneseq
          %v1484 = vshrl.u32 %v1483, 7
          %v1485 = vsub.s32 %v1482, %v1484
          %v1486 = vrot.slane %v1458, %v1485
          %v1487 = vcombine.low %v1465, %v1472
          %v1488 = vcombine.low %v1479, %v1486
          %v1490 = vunpack.c.l.s4 1966171168
          %v1491 = vunpack.c.0.s8 %v1490
          %v1492 = vlaneseq
          %v1493 = vshrl.u32 %v1492, 7
          %v1494 = vsub.s32 %v1491, %v1493
          %v1495 = vrot.slane %v1487, %v1494
          %v1497 = vunpack.c.l.s4 1966171168
          %v1498 = vunpack.c.0.s8 %v1497
          %v1499 = vlaneseq
          %v1500 = vshrl.u32 %v1499, 7
          %v1501 = vsub.s32 %v1498, %v1500
          %v1502 = vrot.slane %v1488, %v1501
          %v1503 = vcombine.low %v1495, %v1502
          %v1504 = vcombine.low %v876, %v880
          %v1505 = vcombine.low %v884, %v888
          %v1506 = vcombine.low %v892, %v896
          %v1507 = vcombine.low %v900, %v904
          %v1509 = vunpack.c.l.s4 1966171168
          %v1510 = vunpack.c.0.s8 %v1509
          %v1511 = vlaneseq
          %v1512 = vshrl.u32 %v1511, 7
          %v1513 = vsub.s32 %v1510, %v1512
          %v1514 = vrot.slane %v1504, %v1513
          %v1516 = vunpack.c.l.s4 1966171168
          %v1517 = vunpack.c.0.s8 %v1516
          %v1518 = vlaneseq
          %v1519 = vshrl.u32 %v1518, 7
          %v1520 = vsub.s32 %v1517, %v1519
          %v1521 = vrot.slane %v1505, %v1520
          %v1523 = vunpack.c.l.s4 1966171168
          %v1524 = vunpack.c.0.s8 %v1523
          %v1525 = vlaneseq
          %v1526 = vshrl.u32 %v1525, 7
          %v1527 = vsub.s32 %v1524, %v1526
          %v1528 = vrot.slane %v1506, %v1527
          %v1530 = vunpack.c.l.s4 1966171168
          %v1531 = vunpack.c.0.s8 %v1530
          %v1532 = vlaneseq
          %v1533 = vshrl.u32 %v1532, 7
          %v1534 = vsub.s32 %v1531, %v1533
          %v1535 = vrot.slane %v1507, %v1534
          %v1536 = vcombine.low %v1514, %v1521
          %v1537 = vcombine.low %v1528, %v1535
          %v1539 = vunpack.c.l.s4 1966171168
          %v1540 = vunpack.c.0.s8 %v1539
          %v1541 = vlaneseq
          %v1542 = vshrl.u32 %v1541, 7
          %v1543 = vsub.s32 %v1540, %v1542
          %v1544 = vrot.slane %v1536, %v1543
          %v1546 = vunpack.c.l.s4 1966171168
          %v1547 = vunpack.c.0.s8 %v1546
          %v1548 = vlaneseq
          %v1549 = vshrl.u32 %v1548, 7
          %v1550 = vsub.s32 %v1547, %v1549
          %v1551 = vrot.slane %v1537, %v1550
          %v1552 = vcombine.low %v1544, %v1551
          %v1553 = vcombine.low %v908, %v912
          %v1554 = vcombine.low %v916, %v920
          %v1555 = vcombine.low %v924, %v928
          %v1556 = vcombine.low %v932, %v936
          %v1558 = vunpack.c.l.s4 1966171168
          %v1559 = vunpack.c.0.s8 %v1558
          %v1560 = vlaneseq
          %v1561 = vshrl.u32 %v1560, 7
          %v1562 = vsub.s32 %v1559, %v1561
          %v1563 = vrot.slane %v1553, %v1562
          %v1565 = vunpack.c.l.s4 1966171168
          %v1566 = vunpack.c.0.s8 %v1565
          %v1567 = vlaneseq
          %v1568 = vshrl.u32 %v1567, 7
          %v1569 = vsub.s32 %v1566, %v1568
          %v1570 = vrot.slane %v1554, %v1569
          %v1572 = vunpack.c.l.s4 1966171168
          %v1573 = vunpack.c.0.s8 %v1572
          %v1574 = vlaneseq
          %v1575 = vshrl.u32 %v1574, 7
          %v1576 = vsub.s32 %v1573, %v1575
          %v1577 = vrot.slane %v1555, %v1576
          %v1579 = vunpack.c.l.s4 1966171168
          %v1580 = vunpack.c.0.s8 %v1579
          %v1581 = vlaneseq
          %v1582 = vshrl.u32 %v1581, 7
          %v1583 = vsub.s32 %v1580, %v1582
          %v1584 = vrot.slane %v1556, %v1583
          %v1585 = vcombine.low %v1563, %v1570
          %v1586 = vcombine.low %v1577, %v1584
          %v1588 = vunpack.c.l.s4 1966171168
          %v1589 = vunpack.c.0.s8 %v1588
          %v1590 = vlaneseq
          %v1591 = vshrl.u32 %v1590, 7
          %v1592 = vsub.s32 %v1589, %v1591
          %v1593 = vrot.slane %v1585, %v1592
          %v1595 = vunpack.c.l.s4 1966171168
          %v1596 = vunpack.c.0.s8 %v1595
          %v1597 = vlaneseq
          %v1598 = vshrl.u32 %v1597, 7
          %v1599 = vsub.s32 %v1596, %v1598
          %v1600 = vrot.slane %v1586, %v1599
          %v1601 = vcombine.low %v1593, %v1600
          %v1602 = vcombine.low %v940, %v944
          %v1603 = vcombine.low %v948, %v952
          %v1604 = vcombine.low %v956, %v960
          %v1605 = vcombine.low %v964, %v968
          %v1607 = vunpack.c.l.s4 1966171168
          %v1608 = vunpack.c.0.s8 %v1607
          %v1609 = vlaneseq
          %v1610 = vshrl.u32 %v1609, 7
          %v1611 = vsub.s32 %v1608, %v1610
          %v1612 = vrot.slane %v1602, %v1611
          %v1614 = vunpack.c.l.s4 1966171168
          %v1615 = vunpack.c.0.s8 %v1614
          %v1616 = vlaneseq
          %v1617 = vshrl.u32 %v1616, 7
          %v1618 = vsub.s32 %v1615, %v1617
          %v1619 = vrot.slane %v1603, %v1618
          %v1621 = vunpack.c.l.s4 1966171168
          %v1622 = vunpack.c.0.s8 %v1621
          %v1623 = vlaneseq
          %v1624 = vshrl.u32 %v1623, 7
          %v1625 = vsub.s32 %v1622, %v1624
          %v1626 = vrot.slane %v1604, %v1625
          %v1628 = vunpack.c.l.s4 1966171168
          %v1629 = vunpack.c.0.s8 %v1628
          %v1630 = vlaneseq
          %v1631 = vshrl.u32 %v1630, 7
          %v1632 = vsub.s32 %v1629, %v1631
          %v1633 = vrot.slane %v1605, %v1632
          %v1634 = vcombine.low %v1612, %v1619
          %v1635 = vcombine.low %v1626, %v1633
          %v1637 = vunpack.c.l.s4 1966171168
          %v1638 = vunpack.c.0.s8 %v1637
          %v1639 = vlaneseq
          %v1640 = vshrl.u32 %v1639, 7
          %v1641 = vsub.s32 %v1638, %v1640
          %v1642 = vrot.slane %v1634, %v1641
          %v1644 = vunpack.c.l.s4 1966171168
          %v1645 = vunpack.c.0.s8 %v1644
          %v1646 = vlaneseq
          %v1647 = vshrl.u32 %v1646, 7
          %v1648 = vsub.s32 %v1645, %v1647
          %v1649 = vrot.slane %v1635, %v1648
          %v1650 = vcombine.low %v1642, %v1649
          %v1651 = vcombine.low %v972, %v976
          %v1652 = vcombine.low %v980, %v984
          %v1653 = vcombine.low %v988, %v992
          %v1654 = vcombine.low %v996, %v1000
          %v1656 = vunpack.c.l.s4 1966171168
          %v1657 = vunpack.c.0.s8 %v1656
          %v1658 = vlaneseq
          %v1659 = vshrl.u32 %v1658, 7
          %v1660 = vsub.s32 %v1657, %v1659
          %v1661 = vrot.slane %v1651, %v1660
          %v1663 = vunpack.c.l.s4 1966171168
          %v1664 = vunpack.c.0.s8 %v1663
          %v1665 = vlaneseq
          %v1666 = vshrl.u32 %v1665, 7
          %v1667 = vsub.s32 %v1664, %v1666
          %v1668 = vrot.slane %v1652, %v1667
          %v1670 = vunpack.c.l.s4 1966171168
          %v1671 = vunpack.c.0.s8 %v1670
          %v1672 = vlaneseq
          %v1673 = vshrl.u32 %v1672, 7
          %v1674 = vsub.s32 %v1671, %v1673
          %v1675 = vrot.slane %v1653, %v1674
          %v1677 = vunpack.c.l.s4 1966171168
          %v1678 = vunpack.c.0.s8 %v1677
          %v1679 = vlaneseq
          %v1680 = vshrl.u32 %v1679, 7
          %v1681 = vsub.s32 %v1678, %v1680
          %v1682 = vrot.slane %v1654, %v1681
          %v1683 = vcombine.low %v1661, %v1668
          %v1684 = vcombine.low %v1675, %v1682
          %v1686 = vunpack.c.l.s4 1966171168
          %v1687 = vunpack.c.0.s8 %v1686
          %v1688 = vlaneseq
          %v1689 = vshrl.u32 %v1688, 7
          %v1690 = vsub.s32 %v1687, %v1689
          %v1691 = vrot.slane %v1683, %v1690
          %v1693 = vunpack.c.l.s4 1966171168
          %v1694 = vunpack.c.0.s8 %v1693
          %v1695 = vlaneseq
          %v1696 = vshrl.u32 %v1695, 7
          %v1697 = vsub.s32 %v1694, %v1696
          %v1698 = vrot.slane %v1684, %v1697
          %v1699 = vcombine.low %v1691, %v1698
          %v1700 = vcombine.low %v1004, %v1008
          %v1701 = vcombine.low %v1012, %v1016
          %v1702 = vcombine.low %v1020, %v1024
          %v1703 = vcombine.low %v1028, %v1032
          %v1705 = vunpack.c.l.s4 1966171168
          %v1706 = vunpack.c.0.s8 %v1705
          %v1707 = vlaneseq
          %v1708 = vshrl.u32 %v1707, 7
          %v1709 = vsub.s32 %v1706, %v1708
          %v1710 = vrot.slane %v1700, %v1709
          %v1712 = vunpack.c.l.s4 1966171168
          %v1713 = vunpack.c.0.s8 %v1712
          %v1714 = vlaneseq
          %v1715 = vshrl.u32 %v1714, 7
          %v1716 = vsub.s32 %v1713, %v1715
          %v1717 = vrot.slane %v1701, %v1716
          %v1719 = vunpack.c.l.s4 1966171168
          %v1720 = vunpack.c.0.s8 %v1719
          %v1721 = vlaneseq
          %v1722 = vshrl.u32 %v1721, 7
          %v1723 = vsub.s32 %v1720, %v1722
          %v1724 = vrot.slane %v1702, %v1723
          %v1726 = vunpack.c.l.s4 1966171168
          %v1727 = vunpack.c.0.s8 %v1726
          %v1728 = vlaneseq
          %v1729 = vshrl.u32 %v1728, 7
          %v1730 = vsub.s32 %v1727, %v1729
          %v1731 = vrot.slane %v1703, %v1730
          %v1732 = vcombine.low %v1710, %v1717
          %v1733 = vcombine.low %v1724, %v1731
          %v1735 = vunpack.c.l.s4 1966171168
          %v1736 = vunpack.c.0.s8 %v1735
          %v1737 = vlaneseq
          %v1738 = vshrl.u32 %v1737, 7
          %v1739 = vsub.s32 %v1736, %v1738
          %v1740 = vrot.slane %v1732, %v1739
          %v1742 = vunpack.c.l.s4 1966171168
          %v1743 = vunpack.c.0.s8 %v1742
          %v1744 = vlaneseq
          %v1745 = vshrl.u32 %v1744, 7
          %v1746 = vsub.s32 %v1743, %v1745
          %v1747 = vrot.slane %v1733, %v1746
          %v1748 = vcombine.low %v1740, %v1747
          %v1749 = vcombine.low %v1036, %v1040
          %v1750 = vcombine.low %v1044, %v1048
          %v1751 = vcombine.low %v1052, %v1056
          %v1752 = vcombine.low %v1060, %v1064
          %v1754 = vunpack.c.l.s4 1966171168
          %v1755 = vunpack.c.0.s8 %v1754
          %v1756 = vlaneseq
          %v1757 = vshrl.u32 %v1756, 7
          %v1758 = vsub.s32 %v1755, %v1757
          %v1759 = vrot.slane %v1749, %v1758
          %v1761 = vunpack.c.l.s4 1966171168
          %v1762 = vunpack.c.0.s8 %v1761
          %v1763 = vlaneseq
          %v1764 = vshrl.u32 %v1763, 7
          %v1765 = vsub.s32 %v1762, %v1764
          %v1766 = vrot.slane %v1750, %v1765
          %v1768 = vunpack.c.l.s4 1966171168
          %v1769 = vunpack.c.0.s8 %v1768
          %v1770 = vlaneseq
          %v1771 = vshrl.u32 %v1770, 7
          %v1772 = vsub.s32 %v1769, %v1771
          %v1773 = vrot.slane %v1751, %v1772
          %v1775 = vunpack.c.l.s4 1966171168
          %v1776 = vunpack.c.0.s8 %v1775
          %v1777 = vlaneseq
          %v1778 = vshrl.u32 %v1777, 7
          %v1779 = vsub.s32 %v1776, %v1778
          %v1780 = vrot.slane %v1752, %v1779
          %v1781 = vcombine.low %v1759, %v1766
          %v1782 = vcombine.low %v1773, %v1780
          %v1784 = vunpack.c.l.s4 1966171168
          %v1785 = vunpack.c.0.s8 %v1784
          %v1786 = vlaneseq
          %v1787 = vshrl.u32 %v1786, 7
          %v1788 = vsub.s32 %v1785, %v1787
          %v1789 = vrot.slane %v1781, %v1788
          %v1791 = vunpack.c.l.s4 1966171168
          %v1792 = vunpack.c.0.s8 %v1791
          %v1793 = vlaneseq
          %v1794 = vshrl.u32 %v1793, 7
          %v1795 = vsub.s32 %v1792, %v1794
          %v1796 = vrot.slane %v1782, %v1795
          %v1797 = vcombine.low %v1789, %v1796
          %v1798 = vcombine.low %v1068, %v1072
          %v1799 = vcombine.low %v1076, %v1080
          %v1800 = vcombine.low %v1084, %v1088
          %v1801 = vcombine.low %v1092, %v1096
          %v1803 = vunpack.c.l.s4 1966171168
          %v1804 = vunpack.c.0.s8 %v1803
          %v1805 = vlaneseq
          %v1806 = vshrl.u32 %v1805, 7
          %v1807 = vsub.s32 %v1804, %v1806
          %v1808 = vrot.slane %v1798, %v1807
          %v1810 = vunpack.c.l.s4 1966171168
          %v1811 = vunpack.c.0.s8 %v1810
          %v1812 = vlaneseq
          %v1813 = vshrl.u32 %v1812, 7
          %v1814 = vsub.s32 %v1811, %v1813
          %v1815 = vrot.slane %v1799, %v1814
          %v1817 = vunpack.c.l.s4 1966171168
          %v1818 = vunpack.c.0.s8 %v1817
          %v1819 = vlaneseq
          %v1820 = vshrl.u32 %v1819, 7
          %v1821 = vsub.s32 %v1818, %v1820
          %v1822 = vrot.slane %v1800, %v1821
          %v1824 = vunpack.c.l.s4 1966171168
          %v1825 = vunpack.c.0.s8 %v1824
          %v1826 = vlaneseq
          %v1827 = vshrl.u32 %v1826, 7
          %v1828 = vsub.s32 %v1825, %v1827
          %v1829 = vrot.slane %v1801, %v1828
          %v1830 = vcombine.low %v1808, %v1815
          %v1831 = vcombine.low %v1822, %v1829
          %v1833 = vunpack.c.l.s4 1966171168
          %v1834 = vunpack.c.0.s8 %v1833
          %v1835 = vlaneseq
          %v1836 = vshrl.u32 %v1835, 7
          %v1837 = vsub.s32 %v1834, %v1836
          %v1838 = vrot.slane %v1830, %v1837
          %v1840 = vunpack.c.l.s4 1966171168
          %v1841 = vunpack.c.0.s8 %v1840
          %v1842 = vlaneseq
          %v1843 = vshrl.u32 %v1842, 7
          %v1844 = vsub.s32 %v1841, %v1843
          %v1845 = vrot.slane %v1831, %v1844
          %v1846 = vcombine.low %v1838, %v1845
          %v1847 = vcombine.low %v1100, %v1104
          %v1848 = vcombine.low %v1108, %v1112
          %v1849 = vcombine.low %v1116, %v1120
          %v1850 = vcombine.low %v1124, %v1128
          %v1852 = vunpack.c.l.s4 1966171168
          %v1853 = vunpack.c.0.s8 %v1852
          %v1854 = vlaneseq
          %v1855 = vshrl.u32 %v1854, 7
          %v1856 = vsub.s32 %v1853, %v1855
          %v1857 = vrot.slane %v1847, %v1856
          %v1859 = vunpack.c.l.s4 1966171168
          %v1860 = vunpack.c.0.s8 %v1859
          %v1861 = vlaneseq
          %v1862 = vshrl.u32 %v1861, 7
          %v1863 = vsub.s32 %v1860, %v1862
          %v1864 = vrot.slane %v1848, %v1863
          %v1866 = vunpack.c.l.s4 1966171168
          %v1867 = vunpack.c.0.s8 %v1866
          %v1868 = vlaneseq
          %v1869 = vshrl.u32 %v1868, 7
          %v1870 = vsub.s32 %v1867, %v1869
          %v1871 = vrot.slane %v1849, %v1870
          %v1873 = vunpack.c.l.s4 1966171168
          %v1874 = vunpack.c.0.s8 %v1873
          %v1875 = vlaneseq
          %v1876 = vshrl.u32 %v1875, 7
          %v1877 = vsub.s32 %v1874, %v1876
          %v1878 = vrot.slane %v1850, %v1877
          %v1879 = vcombine.low %v1857, %v1864
          %v1880 = vcombine.low %v1871, %v1878
          %v1882 = vunpack.c.l.s4 1966171168
          %v1883 = vunpack.c.0.s8 %v1882
          %v1884 = vlaneseq
          %v1885 = vshrl.u32 %v1884, 7
          %v1886 = vsub.s32 %v1883, %v1885
          %v1887 = vrot.slane %v1879, %v1886
          %v1889 = vunpack.c.l.s4 1966171168
          %v1890 = vunpack.c.0.s8 %v1889
          %v1891 = vlaneseq
          %v1892 = vshrl.u32 %v1891, 7
          %v1893 = vsub.s32 %v1890, %v1892
          %v1894 = vrot.slane %v1880, %v1893
          %v1895 = vcombine.low %v1887, %v1894
          %v1896 = vcombine.low %v1132, %v1136
          %v1897 = vcombine.low %v1140, %v1144
          %v1898 = vcombine.low %v1148, %v1152
          %v1899 = vcombine.low %v1156, %v1160
          %v1901 = vunpack.c.l.s4 1966171168
          %v1902 = vunpack.c.0.s8 %v1901
          %v1903 = vlaneseq
          %v1904 = vshrl.u32 %v1903, 7
          %v1905 = vsub.s32 %v1902, %v1904
          %v1906 = vrot.slane %v1896, %v1905
          %v1908 = vunpack.c.l.s4 1966171168
          %v1909 = vunpack.c.0.s8 %v1908
          %v1910 = vlaneseq
          %v1911 = vshrl.u32 %v1910, 7
          %v1912 = vsub.s32 %v1909, %v1911
          %v1913 = vrot.slane %v1897, %v1912
          %v1915 = vunpack.c.l.s4 1966171168
          %v1916 = vunpack.c.0.s8 %v1915
          %v1917 = vlaneseq
          %v1918 = vshrl.u32 %v1917, 7
          %v1919 = vsub.s32 %v1916, %v1918
          %v1920 = vrot.slane %v1898, %v1919
          %v1922 = vunpack.c.l.s4 1966171168
          %v1923 = vunpack.c.0.s8 %v1922
          %v1924 = vlaneseq
          %v1925 = vshrl.u32 %v1924, 7
          %v1926 = vsub.s32 %v1923, %v1925
          %v1927 = vrot.slane %v1899, %v1926
          %v1928 = vcombine.low %v1906, %v1913
          %v1929 = vcombine.low %v1920, %v1927
          %v1931 = vunpack.c.l.s4 1966171168
          %v1932 = vunpack.c.0.s8 %v1931
          %v1933 = vlaneseq
          %v1934 = vshrl.u32 %v1933, 7
          %v1935 = vsub.s32 %v1932, %v1934
          %v1936 = vrot.slane %v1928, %v1935
          %v1938 = vunpack.c.l.s4 1966171168
          %v1939 = vunpack.c.0.s8 %v1938
          %v1940 = vlaneseq
          %v1941 = vshrl.u32 %v1940, 7
          %v1942 = vsub.s32 %v1939, %v1941
          %v1943 = vrot.slane %v1929, %v1942
          %v1944 = vcombine.low %v1936, %v1943
          %1945 = vset.pattern.permute.xlu0 0
          %1946 = vperm.xlu0 %1945, %v1209
          %v1947 = vpop.permute.xlu0 %1946
          %1948 = vset.pattern.permute.xlu0 0
          %1949 = vperm.xlu0 %1948, %v1258
          %v1950 = vpop.permute.xlu0 %1949
          %1951 = vset.pattern.permute.xlu0 0
          %1952 = vperm.xlu0 %1951, %v1307
          %v1953 = vpop.permute.xlu0 %1952
          %1954 = vset.pattern.permute.xlu0 0
          %1955 = vperm.xlu0 %1954, %v1356
          %v1956 = vpop.permute.xlu0 %1955
          %1957 = vset.pattern.permute.xlu0 0
          %1958 = vperm.xlu0 %1957, %v1405
          %v1959 = vpop.permute.xlu0 %1958
          %1960 = vset.pattern.permute.xlu0 0
          %1961 = vperm.xlu0 %1960, %v1454
          %v1962 = vpop.permute.xlu0 %1961
          %1963 = vset.pattern.permute.xlu0 0
          %1964 = vperm.xlu0 %1963, %v1503
          %v1965 = vpop.permute.xlu0 %1964
          %1966 = vset.pattern.permute.xlu0 0
          %1967 = vperm.xlu0 %1966, %v1552
          %v1968 = vpop.permute.xlu0 %1967
          %1969 = vset.pattern.permute.xlu0 0
          %1970 = vperm.xlu0 %1969, %v1601
          %v1971 = vpop.permute.xlu0 %1970
          %1972 = vset.pattern.permute.xlu0 0
          %1973 = vperm.xlu0 %1972, %v1650
          %v1974 = vpop.permute.xlu0 %1973
          %1975 = vset.pattern.permute.xlu0 0
          %1976 = vperm.xlu0 %1975, %v1699
          %v1977 = vpop.permute.xlu0 %1976
          %1978 = vset.pattern.permute.xlu0 0
          %1979 = vperm.xlu0 %1978, %v1748
          %v1980 = vpop.permute.xlu0 %1979
          %1981 = vset.pattern.permute.xlu0 0
          %1982 = vperm.xlu0 %1981, %v1797
          %v1983 = vpop.permute.xlu0 %1982
          %1984 = vset.pattern.permute.xlu0 0
          %1985 = vperm.xlu0 %1984, %v1846
          %v1986 = vpop.permute.xlu0 %1985
          %1987 = vset.pattern.permute.xlu0 0
          %1988 = vperm.xlu0 %1987, %v1895
          %v1989 = vpop.permute.xlu0 %1988
          %1990 = vset.pattern.permute.xlu0 0
          %1991 = vperm.xlu0 %1990, %v1944
          %v1992 = vpop.permute.xlu0 %1991
          %v1993 = vlaneseq
          %v1994 = vand.u32 %v1993, 127
          %v1995 = vlaneseq
          %v1996 = vshrl.u32 %v1995, 7
          %v1997 = vsub.s32 %v1994, %v1996
          %v1998 = vrot.slane %v1947, %v1997
          %v1999 = vadd.s32 %v1994, 4294967288
          %v2000 = vlaneseq
          %v2001 = vshrl.u32 %v2000, 7
          %v2002 = vsub.s32 %v1999, %v2001
          %v2003 = vrot.slane %v1950, %v2002
          %vm2004 = vcmask 130112
          %v2005 = vsel %vm2004, %v2003, %v1998
          %v2006 = vadd.s32 %v1994, 4294967280
          %v2007 = vlaneseq
          %v2008 = vshrl.u32 %v2007, 7
          %v2009 = vsub.s32 %v2006, %v2008
          %v2010 = vrot.slane %v1953, %v2009
          %vm2011 = vcmask 195712
          %v2012 = vsel %vm2011, %v2010, %v2005
          %v2013 = vadd.s32 %v1994, 4294967272
          %v2014 = vlaneseq
          %v2015 = vshrl.u32 %v2014, 7
          %v2016 = vsub.s32 %v2013, %v2015
          %v2017 = vrot.slane %v1956, %v2016
          %vm2018 = vcmask 261312
          %v2019 = vsel %vm2018, %v2017, %v2012
          %v2020 = vadd.s32 %v1994, 4294967264
          %v2021 = vlaneseq
          %v2022 = vshrl.u32 %v2021, 7
          %v2023 = vsub.s32 %v2020, %v2022
          %v2024 = vrot.slane %v1959, %v2023
          %vm2025 = vcmask 326912
          %v2026 = vsel %vm2025, %v2024, %v2019
          %v2027 = vadd.s32 %v1994, 4294967256
          %v2028 = vlaneseq
          %v2029 = vshrl.u32 %v2028, 7
          %v2030 = vsub.s32 %v2027, %v2029
          %v2031 = vrot.slane %v1962, %v2030
          %vm2032 = vcmask 392512
          %v2033 = vsel %vm2032, %v2031, %v2026
          %v2034 = vadd.s32 %v1994, 4294967248
          %v2035 = vlaneseq
          %v2036 = vshrl.u32 %v2035, 7
          %v2037 = vsub.s32 %v2034, %v2036
          %v2038 = vrot.slane %v1965, %v2037
          %vm2039 = vcmask 458112
          %v2040 = vsel %vm2039, %v2038, %v2033
          %v2041 = vadd.s32 %v1994, 4294967240
          %v2042 = vlaneseq
          %v2043 = vshrl.u32 %v2042, 7
          %v2044 = vsub.s32 %v2041, %v2043
          %v2045 = vrot.slane %v1968, %v2044
          %vm2046 = vcmask 523712
          %v2047 = vsel %vm2046, %v2045, %v2040
          %v2048 = vadd.s32 %v1994, 4294967232
          %v2049 = vlaneseq
          %v2050 = vshrl.u32 %v2049, 7
          %v2051 = vsub.s32 %v2048, %v2050
          %v2052 = vrot.slane %v1971, %v2051
          %vm2053 = vcmask 589312
          %v2054 = vsel %vm2053, %v2052, %v2047
          %v2055 = vadd.s32 %v1994, 4294967224
          %v2056 = vlaneseq
          %v2057 = vshrl.u32 %v2056, 7
          %v2058 = vsub.s32 %v2055, %v2057
          %v2059 = vrot.slane %v1974, %v2058
          %vm2060 = vcmask 654912
          %v2061 = vsel %vm2060, %v2059, %v2054
          %v2062 = vadd.s32 %v1994, 4294967216
          %v2063 = vlaneseq
          %v2064 = vshrl.u32 %v2063, 7
          %v2065 = vsub.s32 %v2062, %v2064
          %v2066 = vrot.slane %v1977, %v2065
          %vm2067 = vcmask 720512
          %v2068 = vsel %vm2067, %v2066, %v2061
          %v2069 = vadd.s32 %v1994, 4294967208
          %v2070 = vlaneseq
          %v2071 = vshrl.u32 %v2070, 7
          %v2072 = vsub.s32 %v2069, %v2071
          %v2073 = vrot.slane %v1980, %v2072
          %vm2074 = vcmask 786112
          %v2075 = vsel %vm2074, %v2073, %v2068
          %v2076 = vadd.s32 %v1994, 4294967200
          %v2077 = vlaneseq
          %v2078 = vshrl.u32 %v2077, 7
          %v2079 = vsub.s32 %v2076, %v2078
          %v2080 = vrot.slane %v1983, %v2079
          %vm2081 = vcmask 851712
          %v2082 = vsel %vm2081, %v2080, %v2075
          %v2083 = vadd.s32 %v1994, 4294967192
          %v2084 = vlaneseq
          %v2085 = vshrl.u32 %v2084, 7
          %v2086 = vsub.s32 %v2083, %v2085
          %v2087 = vrot.slane %v1986, %v2086
          %vm2088 = vcmask 917312
          %v2089 = vsel %vm2088, %v2087, %v2082
          %v2090 = vadd.s32 %v1994, 4294967184
          %v2091 = vlaneseq
          %v2092 = vshrl.u32 %v2091, 7
          %v2093 = vsub.s32 %v2090, %v2092
          %v2094 = vrot.slane %v1989, %v2093
          %vm2095 = vcmask 982912
          %v2096 = vsel %vm2095, %v2094, %v2089
          %v2097 = vadd.s32 %v1994, 4294967176
          %v2098 = vlaneseq
          %v2099 = vshrl.u32 %v2098, 7
          %v2100 = vsub.s32 %v2097, %v2099
          %v2101 = vrot.slane %v1992, %v2100
          %vm2102 = vcmask 1048512
          %v2103 = vsel %vm2102, %v2101, %v2096
          %v2105 = vunpack.c.l.s4 1966171168
          %v2106 = vunpack.c.0.s8 %v2105
          %v2107 = vlaneseq
          %v2108 = vshrl.u32 %v2107, 7
          %v2109 = vsub.s32 %v2106, %v2108
          %v2110 = vrot.slane %v2103, %v2109
          %v2112 = vunpack.c.l.s4 1966171168
          %v2113 = vunpack.c.0.s8 %v2112
          %v2114 = vlaneseq
          %v2115 = vshrl.u32 %v2114, 7
          %v2116 = vsub.s32 %v2113, %v2115
          %v2117 = vrot.slane %v2110, %v2116
          %v2119 = vadd.f32 %v632, %v2117
          %2120 = vst [vmem:[%s297] sm:$0x1] %v2119
        $region85: #{semidual_row_mins.1} parent=72 // pred_fallthru
          _
        %s2121 = sand.u32 %s142, 1
        %s2122 = scalar_lea.sflag [#allocation5], %s2121
        %s2123 = sand.u32 %s142, 1
        %s2124 = scalar_lea.vmem [#allocation4], %s2123
        // Predicated region
        $region86: #{semidual_row_mins.1} parent=72 // pred_check
          %p2125 = pneg %p152
        $region87: #{semidual_row_mins.1} parent=72 // pred_check_branch
          %2127 = sbr.rel (%p2125) target = $region89
        $region88: #{semidual_row_mins.1} parent=72 // pred_region
          %s2129 = ssub.s32 16, 16
          %2130 = vsyncadd %s2122, %s2129
          %s2131 = smul.addr %s22, 16
          %s2132 = scalar_lea.hbm %s4, %s2131
          %s2134 = sshll.u32 %s2124, 4
          %s2135 = int_to_ptr.vmem [resolvable:$true] %s2134
          %2137 = dma.vmem_to_hbm [thread:$0]  %s2135, 16, %s2132, %s2122
        $region89: #{semidual_row_mins.1} parent=72 // pred_fallthru
          _
      $region73: #{semidual_row_mins.1} parent=5 // pred_fallthru
        _
      %p2138 = scmp.le.s32.totalorder 2, %s13
      // Predicated region
      $region90: #{semidual_row_mins.1} parent=5 // pred_check
        %p2139 = pneg %p2138
      $region91: #{semidual_row_mins.1} parent=5 // pred_check_branch
        %2141 = sbr.rel (%p2139) target = $region93
      $region92: #{semidual_row_mins.1} parent=5 // pred_region
        %s2142 = ssub.s32 %s13, 2
        // Predicated region
        $region94: #{semidual_row_mins.1} parent=92 // pred_check
          %p2143 = pneg %p158
        $region95: #{semidual_row_mins.1} parent=92 // pred_check_branch
          %2145 = sbr.rel (%p2143) target = $region97
        $region96: #{semidual_row_mins.1} parent=92 // pred_region
          %s2146 = sand.u32 %s143, 1
          %s2147 = scalar_lea.sflag [#allocation5], %s2146
          %s2148 = sand.u32 %s143, 1
          %s2149 = scalar_lea.vmem [#allocation4], %s2148
          %2150 = dma.done %s2147, 16
        $region97: #{semidual_row_mins.1} parent=92 // pred_fallthru
          _
      $region93: #{semidual_row_mins.1} parent=5 // pred_fallthru
        _
    $region6: #{semidual_row_mins.1} parent=1 // loop_footer
      %s17 = sadd.s32 1, %s13
    $region7: #{semidual_row_mins.1} parent=1 // loop_footer_branch
      %12 = sbr.rel target = $region3
    $region8: #{semidual_row_mins.1} parent=1 // loop_exit
      _
    %2151 = vsyncpa [#allocation5], 1
    %s2152 = scalar_lea.sflag [#allocation5], 1
    %2153 = vsyncpa %s2152, 1

</llo_original>
